<compile_context>
chip_gen: v7x
topology: tpu7x:2x2x1
jax: 0.10.0
libtpu: 0.0.40
codegen_flags: <defaults>
</compile_context>

<pallas_src>
import numpy as np

import jax
import jax.numpy as jnp
from jax.experimental import pallas as pl
from jax.experimental.pallas import tpu as pltpu


def fused_conv3_relu_kernel(x_ref, w1_ref, b1_ref, w2_ref, b2_ref,
                            w3_ref, b3_ref, o_ref):
    # x_ref  : (H, W*Cin)            one image, lane-dense (x-major, c-minor)
    # w*_ref : (3, W*Cin_l, W*Cout)  banded weights, one (K, N) slab per ky, bf16
    # b*_ref : (1, W*Cout)           biases, pre-tiled lane-dense, f32
    # o_ref  : (H, W*Cout)           lane-dense output slab (post-ReLU), f32
    H = x_ref.shape[0]

    def conv_bias_relu(a, wk_ref, b_ref):
        # a: (H, W*Cin_l) f32 activation in lane-dense layout.
        rows = jax.lax.broadcasted_iota(jnp.int32, a.shape, 0)
        # a_dn[y] = a[y-1] (zero row at y = 0)     -> tap ky = 0
        # a_up[y] = a[y+1] (zero row at y = H - 1) -> tap ky = 2
        # Sublane rolls run on the XLU; the wrapped border row is masked.
        a_dn = jnp.where(rows == 0, 0.0, pltpu.roll(a, shift=1, axis=0))
        a_up = jnp.where(rows == H - 1, 0.0, pltpu.roll(a, shift=H - 1, axis=0))
        # Three lane-dense MXU matmuls; the banded weights already encode the
        # kx taps and the x zero-padding.  bf16 operands, f32 accumulate.
        acc = jnp.dot(a_dn.astype(jnp.bfloat16), wk_ref[0],
                      preferred_element_type=jnp.float32)
        acc += jnp.dot(a.astype(jnp.bfloat16), wk_ref[1],
                       preferred_element_type=jnp.float32)
        acc += jnp.dot(a_up.astype(jnp.bfloat16), wk_ref[2],
                       preferred_element_type=jnp.float32)
        # Bias + ReLU in f32 on full 128-lane vregs.
        return jnp.maximum(acc + b_ref[...], 0.0)            # (H, W*Cout) f32

    h = conv_bias_relu(x_ref[...], w1_ref, b1_ref)           # layer 1
    h = conv_bias_relu(h, w2_ref, b2_ref)                    # layer 2
    h = conv_bias_relu(h, w3_ref, b3_ref)                    # layer 3
    o_ref[...] = h.astype(o_ref.dtype)


def _banded_weights(w_hwio, W):
    """(3,3,Cin,Cout) HWIO conv weights -> (3, W*Cin, W*Cout) banded matrices.

    Wk[ky][xs*Cin+ci, xo*Cout+co] = w[ky, xs-xo+1, ci, co] when |xs-xo| <= 1,
    else 0, so a single (H, W*Cin) @ Wk[ky] matmul applies all three kx taps
    of row-offset ky, with x padding handled by the band edges.
    """
    kx = np.arange(3)[:, None, None]
    xs = np.arange(W)[None, :, None]
    xo = np.arange(W)[None, None, :]
    ind = jnp.asarray((xs == xo + kx - 1).astype(np.float32))      # (3, W, W)
    wb = jnp.einsum('kst,ykio->ysito', ind, w_hwio)                # (3,W,Ci,W,Co)
    Cin, Cout = w_hwio.shape[2], w_hwio.shape[3]
    return wb.reshape(3, W * Cin, W * Cout)


def conv_layer_3_pallas(params, x_nchw):
    """Fused conv1->relu->conv2->relu->conv3->relu, one pallas_call."""
    N, Cin, H, W = x_nchw.shape
    w1, b1 = params["conv1"]
    w2, b2 = params["conv2"]
    w3, b3 = params["conv3"]
    Cout = w1.shape[-1]

    # NCHW -> lane-dense (N, H, W*Cin).  The NCHW<->NHWC transposes at the
    # boundary are kept only to match the PyTorch module's interface; a model
    # that stays NHWC / lane-dense end-to-end should drop them.
    x2d = jnp.transpose(x_nchw, (0, 2, 3, 1)).reshape(N, H, W * Cin)

    # Banded, bf16 weights and lane-dense f32 biases (built once, outside the
    # kernel).
    w1b = _banded_weights(w1, W).astype(jnp.bfloat16)   # (3, W*Cin,  W*Cout)
    w2b = _banded_weights(w2, W).astype(jnp.bfloat16)   # (3, W*Cout, W*Cout)
    w3b = _banded_weights(w3, W).astype(jnp.bfloat16)   # (3, W*Cout, W*Cout)
    b1t = jnp.tile(b1, W).reshape(1, W * Cout)
    b2t = jnp.tile(b2, W).reshape(1, W * Cout)
    b3t = jnp.tile(b3, W).reshape(1, W * Cout)

    out2d = pl.pallas_call(
        fused_conv3_relu_kernel,
        out_shape=jax.ShapeDtypeStruct((N, H, W * Cout), jnp.float32),
        grid_spec=pltpu.PrefetchScalarGridSpec(
            num_scalar_prefetch=0,
            grid=(N,),
            in_specs=[
                pl.BlockSpec((None, H, W * Cin), lambda n: (n, 0, 0)),
                pl.BlockSpec((3, W * Cin, W * Cout), lambda n: (0, 0, 0)),
                pl.BlockSpec((1, W * Cout), lambda n: (0, 0)),
                pl.BlockSpec((3, W * Cout, W * Cout), lambda n: (0, 0, 0)),
                pl.BlockSpec((1, W * Cout), lambda n: (0, 0)),
                pl.BlockSpec((3, W * Cout, W * Cout), lambda n: (0, 0, 0)),
                pl.BlockSpec((1, W * Cout), lambda n: (0, 0)),
            ],
            out_specs=pl.BlockSpec((None, H, W * Cout), lambda n: (n, 0, 0)),
        ),
        compiler_params=pltpu.CompilerParams(
            dimension_semantics=("parallel",)),
    )(x2d, w1b, b1t, w2b, b2t, w3b, b3t)

    out_nhwc = out2d.reshape(N, H, W, Cout)
    return jnp.transpose(out_nhwc, (0, 3, 1, 2))                 # back to NCHW


# ----------------------- parameter init (deterministic) -----------------------

def init_conv_params(key, c_in, c_out):
    # mimic PyTorch's default Conv2d init scale: U(-1/sqrt(fan_in), 1/sqrt(fan_in))
    kw, kb = jax.random.split(key)
    bound = 1.0 / (c_in * 9) ** 0.5
    w = jax.random.uniform(kw, (3, 3, c_in, c_out), jnp.float32, -bound, bound)
    b = jax.random.uniform(kb, (c_out,), jnp.float32, -bound, bound)
    return w, b


def conv_layer_3_init(key, channel_in, channel_out):
    k1, k2, k3 = jax.random.split(key, 3)
    return {
        "conv1": init_conv_params(k1, channel_in, channel_out),
        "conv2": init_conv_params(k2, channel_out, channel_out),
        "conv3": init_conv_params(k3, channel_out, channel_out),
    }


# ------------------------------- forward pass --------------------------------

@jax.jit
def conv_layer_3_forward(params, x_nchw):
    return conv_layer_3_pallas(params, x_nchw)


@jax.jit
def conv_layer_3_reference(params, x_nchw):
    # pure-JAX f32 reference (lax conv) for a correctness sanity check
    x = jnp.transpose(x_nchw, (0, 2, 3, 1))
    for name in ("conv1", "conv2", "conv3"):
        w, b = params[name]
        x = jax.lax.conv_general_dilated(
            x, w, window_strides=(1, 1), padding="SAME",
            dimension_numbers=("NHWC", "HWIO", "NHWC"))
        x = jax.nn.relu(x + b)
    return jnp.transpose(x, (0, 3, 1, 2))


if __name__ == "__main__":
    key = jax.random.PRNGKey(0)
    kp, kx = jax.random.split(key)

    channel_in, channel_out = 4, 8
    N, H, W = 2, 16, 16

    params = conv_layer_3_init(kp, channel_in, channel_out)
    x = jax.random.normal(kx, (N, channel_in, H, W), dtype=jnp.float32)

    out = conv_layer_3_forward(params, x)
    out = jax.block_until_ready(out)

    assert out.shape == (N, channel_out, H, W), out.shape
    assert out.dtype == jnp.float32

    ref = jax.block_until_ready(conv_layer_3_reference(params, x))
    # Tolerance accounts for bf16 MXU operands (per perf review) vs. the pure
    # f32 reference, compounded over 3 conv layers; layout/tap bugs would show
    # up as O(1) errors, far above this.
    if not bool(jnp.allclose(out, ref, atol=2e-2, rtol=2e-2)):
        raise AssertionError("Pallas conv_layer_3 output mismatch vs reference")

    print("KERNEL_OK")
</pallas_src>

<mosaic_0001>
module attributes {stable_mosaic.version = 11 : i64} {
  func.func @fused_conv3_relu_kernel(%arg0: i32, %arg1: memref<1x16x64xf32, #tpu.memory_space<vmem>>, %arg2: memref<3x64x128xbf16, #tpu.memory_space<vmem>>, %arg3: memref<1x128xf32, #tpu.memory_space<vmem>>, %arg4: memref<3x128x128xbf16, #tpu.memory_space<vmem>>, %arg5: memref<1x128xf32, #tpu.memory_space<vmem>>, %arg6: memref<3x128x128xbf16, #tpu.memory_space<vmem>>, %arg7: memref<1x128xf32, #tpu.memory_space<vmem>>, %arg8: memref<1x16x128xf32, #tpu.memory_space<vmem>>) attributes {dimension_semantics = [#tpu.dimension_semantics<parallel>], iteration_bounds = array<i64: 2>, scalar_prefetch = 0 : i64, scratch_operands = 0 : i64, tpu.core_type = #tpu.core_type<tc>, window_params = [{transform_indices = @transform_0, window_bounds = array<i64: 1, 16, 64>}, {pipeline_mode = #tpu.pipeline_mode<synchronous>, transform_indices = @transform_1, window_bounds = array<i64: 3, 64, 128>}, {pipeline_mode = #tpu.pipeline_mode<synchronous>, transform_indices = @transform_2, window_bounds = array<i64: 1, 128>}, {pipeline_mode = #tpu.pipeline_mode<synchronous>, transform_indices = @transform_3, window_bounds = array<i64: 3, 128, 128>}, {pipeline_mode = #tpu.pipeline_mode<synchronous>, transform_indices = @transform_4, window_bounds = array<i64: 1, 128>}, {pipeline_mode = #tpu.pipeline_mode<synchronous>, transform_indices = @transform_5, window_bounds = array<i64: 3, 128, 128>}, {pipeline_mode = #tpu.pipeline_mode<synchronous>, transform_indices = @transform_6, window_bounds = array<i64: 1, 128>}, {transform_indices = @transform_7, window_bounds = array<i64: 1, 16, 128>}]} {
    %c0 = arith.constant 0 : index
    %c0_0 = arith.constant 0 : index
    %c0_1 = arith.constant 0 : index
    %0 = vector.load %arg1[%c0, %c0_0, %c0_1] : memref<1x16x64xf32, #tpu.memory_space<vmem>>, vector<1x16x64xf32>
    %1 = vector.shape_cast %0 : vector<1x16x64xf32> to vector<16x64xf32>
    %2 = tpu.iota {dimensions = array<i32: 0>} : vector<16x64xi32>
    %c0_i32 = arith.constant 0 : i32
    %3 = vector.broadcast %c0_i32 : i32 to vector<16x64xi32>
    %4 = arith.cmpi eq, %2, %3 : vector<16x64xi32>
    %c1_i32 = arith.constant 1 : i32
    %5 = tpu.dynamic_rotate %1 by %c1_i32 dim 0 : vector<16x64xf32>, i32 -> vector<16x64xf32>
    %cst = arith.constant 0.000000e+00 : f32
    %6 = vector.broadcast %cst : f32 to vector<16x64xf32>
    %7 = arith.select %4, %6, %5 : vector<16x64xi1>, vector<16x64xf32>
    %c15_i32 = arith.constant 15 : i32
    %8 = vector.broadcast %c15_i32 : i32 to vector<16x64xi32>
    %9 = arith.cmpi eq, %2, %8 : vector<16x64xi32>
    %c15_i32_2 = arith.constant 15 : i32
    %10 = tpu.dynamic_rotate %1 by %c15_i32_2 dim 0 : vector<16x64xf32>, i32 -> vector<16x64xf32>
    %cst_3 = arith.constant 0.000000e+00 : f32
    %11 = vector.broadcast %cst_3 : f32 to vector<16x64xf32>
    %12 = arith.select %9, %11, %10 : vector<16x64xi1>, vector<16x64xf32>
    %13 = arith.truncf %7 : vector<16x64xf32> to vector<16x64xbf16>
    %c0_4 = arith.constant 0 : index
    %c0_5 = arith.constant 0 : index
    %c0_6 = arith.constant 0 : index
    %14 = vector.load %arg2[%c0_4, %c0_5, %c0_6] : memref<3x64x128xbf16, #tpu.memory_space<vmem>>, vector<1x64x128xbf16>
    %15 = vector.shape_cast %14 : vector<1x64x128xbf16> to vector<64x128xbf16>
    %cst_7 = arith.constant dense<0.000000e+00> : vector<16x128xf32>
    %16 = tpu.matmul %13, %15, %cst_7 {dimension_numbers = #tpu.dot_dimension_numbers<[1], [0], [0], [1], [0, 0, 1, 1], [], []>} : vector<16x64xbf16>, vector<64x128xbf16>, vector<16x128xf32> -> vector<16x128xf32>
    %17 = arith.truncf %1 : vector<16x64xf32> to vector<16x64xbf16>
    %c1 = arith.constant 1 : index
    %c0_8 = arith.constant 0 : index
    %c0_9 = arith.constant 0 : index
    %18 = vector.load %arg2[%c1, %c0_8, %c0_9] : memref<3x64x128xbf16, #tpu.memory_space<vmem>>, vector<1x64x128xbf16>
    %19 = vector.shape_cast %18 : vector<1x64x128xbf16> to vector<64x128xbf16>
    %cst_10 = arith.constant dense<0.000000e+00> : vector<16x128xf32>
    %20 = tpu.matmul %17, %19, %cst_10 {dimension_numbers = #tpu.dot_dimension_numbers<[1], [0], [0], [1], [0, 0, 1, 1], [], []>} : vector<16x64xbf16>, vector<64x128xbf16>, vector<16x128xf32> -> vector<16x128xf32>
    %21 = arith.addf %16, %20 : vector<16x128xf32>
    %22 = arith.truncf %12 : vector<16x64xf32> to vector<16x64xbf16>
    %c2 = arith.constant 2 : index
    %c0_11 = arith.constant 0 : index
    %c0_12 = arith.constant 0 : index
    %23 = vector.load %arg2[%c2, %c0_11, %c0_12] : memref<3x64x128xbf16, #tpu.memory_space<vmem>>, vector<1x64x128xbf16>
    %24 = vector.shape_cast %23 : vector<1x64x128xbf16> to vector<64x128xbf16>
    %cst_13 = arith.constant dense<0.000000e+00> : vector<16x128xf32>
    %25 = tpu.matmul %22, %24, %cst_13 {dimension_numbers = #tpu.dot_dimension_numbers<[1], [0], [0], [1], [0, 0, 1, 1], [], []>} : vector<16x64xbf16>, vector<64x128xbf16>, vector<16x128xf32> -> vector<16x128xf32>
    %26 = arith.addf %21, %25 : vector<16x128xf32>
    %c0_14 = arith.constant 0 : index
    %c0_15 = arith.constant 0 : index
    %27 = vector.load %arg3[%c0_14, %c0_15] : memref<1x128xf32, #tpu.memory_space<vmem>>, vector<1x128xf32>
    %28 = vector.broadcast %27 : vector<1x128xf32> to vector<16x128xf32>
    %29 = arith.addf %26, %28 : vector<16x128xf32>
    %cst_16 = arith.constant 0.000000e+00 : f32
    %30 = vector.broadcast %cst_16 : f32 to vector<16x128xf32>
    %31 = arith.maximumf %29, %30 : vector<16x128xf32>
    %32 = tpu.iota {dimensions = array<i32: 0>} : vector<16x128xi32>
    %c0_i32_17 = arith.constant 0 : i32
    %33 = vector.broadcast %c0_i32_17 : i32 to vector<16x128xi32>
    %34 = arith.cmpi eq, %32, %33 : vector<16x128xi32>
    %c1_i32_18 = arith.constant 1 : i32
    %35 = tpu.dynamic_rotate %31 by %c1_i32_18 dim 0 : vector<16x128xf32>, i32 -> vector<16x128xf32>
    %cst_19 = arith.constant 0.000000e+00 : f32
    %36 = vector.broadcast %cst_19 : f32 to vector<16x128xf32>
    %37 = arith.select %34, %36, %35 : vector<16x128xi1>, vector<16x128xf32>
    %c15_i32_20 = arith.constant 15 : i32
    %38 = vector.broadcast %c15_i32_20 : i32 to vector<16x128xi32>
    %39 = arith.cmpi eq, %32, %38 : vector<16x128xi32>
    %c15_i32_21 = arith.constant 15 : i32
    %40 = tpu.dynamic_rotate %31 by %c15_i32_21 dim 0 : vector<16x128xf32>, i32 -> vector<16x128xf32>
    %cst_22 = arith.constant 0.000000e+00 : f32
    %41 = vector.broadcast %cst_22 : f32 to vector<16x128xf32>
    %42 = arith.select %39, %41, %40 : vector<16x128xi1>, vector<16x128xf32>
    %43 = arith.truncf %37 : vector<16x128xf32> to vector<16x128xbf16>
    %c0_23 = arith.constant 0 : index
    %c0_24 = arith.constant 0 : index
    %c0_25 = arith.constant 0 : index
    %44 = vector.load %arg4[%c0_23, %c0_24, %c0_25] : memref<3x128x128xbf16, #tpu.memory_space<vmem>>, vector<1x128x128xbf16>
    %45 = vector.shape_cast %44 : vector<1x128x128xbf16> to vector<128x128xbf16>
    %cst_26 = arith.constant dense<0.000000e+00> : vector<16x128xf32>
    %46 = tpu.matmul %43, %45, %cst_26 {dimension_numbers = #tpu.dot_dimension_numbers<[1], [0], [0], [1], [0, 0, 1, 1], [], []>} : vector<16x128xbf16>, vector<128x128xbf16>, vector<16x128xf32> -> vector<16x128xf32>
    %47 = arith.truncf %31 : vector<16x128xf32> to vector<16x128xbf16>
    %c1_27 = arith.constant 1 : index
    %c0_28 = arith.constant 0 : index
    %c0_29 = arith.constant 0 : index
    %48 = vector.load %arg4[%c1_27, %c0_28, %c0_29] : memref<3x128x128xbf16, #tpu.memory_space<vmem>>, vector<1x128x128xbf16>
    %49 = vector.shape_cast %48 : vector<1x128x128xbf16> to vector<128x128xbf16>
    %cst_30 = arith.constant dense<0.000000e+00> : vector<16x128xf32>
    %50 = tpu.matmul %47, %49, %cst_30 {dimension_numbers = #tpu.dot_dimension_numbers<[1], [0], [0], [1], [0, 0, 1, 1], [], []>} : vector<16x128xbf16>, vector<128x128xbf16>, vector<16x128xf32> -> vector<16x128xf32>
    %51 = arith.addf %46, %50 : vector<16x128xf32>
    %52 = arith.truncf %42 : vector<16x128xf32> to vector<16x128xbf16>
    %c2_31 = arith.constant 2 : index
    %c0_32 = arith.constant 0 : index
    %c0_33 = arith.constant 0 : index
    %53 = vector.load %arg4[%c2_31, %c0_32, %c0_33] : memref<3x128x128xbf16, #tpu.memory_space<vmem>>, vector<1x128x128xbf16>
    %54 = vector.shape_cast %53 : vector<1x128x128xbf16> to vector<128x128xbf16>
    %cst_34 = arith.constant dense<0.000000e+00> : vector<16x128xf32>
    %55 = tpu.matmul %52, %54, %cst_34 {dimension_numbers = #tpu.dot_dimension_numbers<[1], [0], [0], [1], [0, 0, 1, 1], [], []>} : vector<16x128xbf16>, vector<128x128xbf16>, vector<16x128xf32> -> vector<16x128xf32>
    %56 = arith.addf %51, %55 : vector<16x128xf32>
    %c0_35 = arith.constant 0 : index
    %c0_36 = arith.constant 0 : index
    %57 = vector.load %arg5[%c0_35, %c0_36] : memref<1x128xf32, #tpu.memory_space<vmem>>, vector<1x128xf32>
    %58 = vector.broadcast %57 : vector<1x128xf32> to vector<16x128xf32>
    %59 = arith.addf %56, %58 : vector<16x128xf32>
    %cst_37 = arith.constant 0.000000e+00 : f32
    %60 = vector.broadcast %cst_37 : f32 to vector<16x128xf32>
    %61 = arith.maximumf %59, %60 : vector<16x128xf32>
    %62 = tpu.iota {dimensions = array<i32: 0>} : vector<16x128xi32>
    %c0_i32_38 = arith.constant 0 : i32
    %63 = vector.broadcast %c0_i32_38 : i32 to vector<16x128xi32>
    %64 = arith.cmpi eq, %62, %63 : vector<16x128xi32>
    %c1_i32_39 = arith.constant 1 : i32
    %65 = tpu.dynamic_rotate %61 by %c1_i32_39 dim 0 : vector<16x128xf32>, i32 -> vector<16x128xf32>
    %cst_40 = arith.constant 0.000000e+00 : f32
    %66 = vector.broadcast %cst_40 : f32 to vector<16x128xf32>
    %67 = arith.select %64, %66, %65 : vector<16x128xi1>, vector<16x128xf32>
    %c15_i32_41 = arith.constant 15 : i32
    %68 = vector.broadcast %c15_i32_41 : i32 to vector<16x128xi32>
    %69 = arith.cmpi eq, %62, %68 : vector<16x128xi32>
    %c15_i32_42 = arith.constant 15 : i32
    %70 = tpu.dynamic_rotate %61 by %c15_i32_42 dim 0 : vector<16x128xf32>, i32 -> vector<16x128xf32>
    %cst_43 = arith.constant 0.000000e+00 : f32
    %71 = vector.broadcast %cst_43 : f32 to vector<16x128xf32>
    %72 = arith.select %69, %71, %70 : vector<16x128xi1>, vector<16x128xf32>
    %73 = arith.truncf %67 : vector<16x128xf32> to vector<16x128xbf16>
    %c0_44 = arith.constant 0 : index
    %c0_45 = arith.constant 0 : index
    %c0_46 = arith.constant 0 : index
    %74 = vector.load %arg6[%c0_44, %c0_45, %c0_46] : memref<3x128x128xbf16, #tpu.memory_space<vmem>>, vector<1x128x128xbf16>
    %75 = vector.shape_cast %74 : vector<1x128x128xbf16> to vector<128x128xbf16>
    %cst_47 = arith.constant dense<0.000000e+00> : vector<16x128xf32>
    %76 = tpu.matmul %73, %75, %cst_47 {dimension_numbers = #tpu.dot_dimension_numbers<[1], [0], [0], [1], [0, 0, 1, 1], [], []>} : vector<16x128xbf16>, vector<128x128xbf16>, vector<16x128xf32> -> vector<16x128xf32>
    %77 = arith.truncf %61 : vector<16x128xf32> to vector<16x128xbf16>
    %c1_48 = arith.constant 1 : index
    %c0_49 = arith.constant 0 : index
    %c0_50 = arith.constant 0 : index
    %78 = vector.load %arg6[%c1_48, %c0_49, %c0_50] : memref<3x128x128xbf16, #tpu.memory_space<vmem>>, vector<1x128x128xbf16>
    %79 = vector.shape_cast %78 : vector<1x128x128xbf16> to vector<128x128xbf16>
    %cst_51 = arith.constant dense<0.000000e+00> : vector<16x128xf32>
    %80 = tpu.matmul %77, %79, %cst_51 {dimension_numbers = #tpu.dot_dimension_numbers<[1], [0], [0], [1], [0, 0, 1, 1], [], []>} : vector<16x128xbf16>, vector<128x128xbf16>, vector<16x128xf32> -> vector<16x128xf32>
    %81 = arith.addf %76, %80 : vector<16x128xf32>
    %82 = arith.truncf %72 : vector<16x128xf32> to vector<16x128xbf16>
    %c2_52 = arith.constant 2 : index
    %c0_53 = arith.constant 0 : index
    %c0_54 = arith.constant 0 : index
    %83 = vector.load %arg6[%c2_52, %c0_53, %c0_54] : memref<3x128x128xbf16, #tpu.memory_space<vmem>>, vector<1x128x128xbf16>
    %84 = vector.shape_cast %83 : vector<1x128x128xbf16> to vector<128x128xbf16>
    %cst_55 = arith.constant dense<0.000000e+00> : vector<16x128xf32>
    %85 = tpu.matmul %82, %84, %cst_55 {dimension_numbers = #tpu.dot_dimension_numbers<[1], [0], [0], [1], [0, 0, 1, 1], [], []>} : vector<16x128xbf16>, vector<128x128xbf16>, vector<16x128xf32> -> vector<16x128xf32>
    %86 = arith.addf %81, %85 : vector<16x128xf32>
    %c0_56 = arith.constant 0 : index
    %c0_57 = arith.constant 0 : index
    %87 = vector.load %arg7[%c0_56, %c0_57] : memref<1x128xf32, #tpu.memory_space<vmem>>, vector<1x128xf32>
    %88 = vector.broadcast %87 : vector<1x128xf32> to vector<16x128xf32>
    %89 = arith.addf %86, %88 : vector<16x128xf32>
    %cst_58 = arith.constant 0.000000e+00 : f32
    %90 = vector.broadcast %cst_58 : f32 to vector<16x128xf32>
    %91 = arith.maximumf %89, %90 : vector<16x128xf32>
    %c0_59 = arith.constant 0 : index
    %c0_60 = arith.constant 0 : index
    %c0_61 = arith.constant 0 : index
    %92 = vector.load %arg8[%c0_59, %c0_60, %c0_61] : memref<1x16x128xf32, #tpu.memory_space<vmem>>, vector<1x16x128xf32>
    %93 = vector.shape_cast %92 : vector<1x16x128xf32> to vector<16x128xf32>
    %94 = vector.shape_cast %91 : vector<16x128xf32> to vector<1x16x128xf32>
    tpu.vector_store %arg8[%c0_59, %c0_60, %c0_61], %94 {strides = array<i32>} : memref<1x16x128xf32, #tpu.memory_space<vmem>>, vector<1x16x128xf32>,
    return
  }
  func.func @transform_0(%arg0: i32) -> (i32, i32, i32) {
    %c0_i32 = arith.constant 0 : i32
    %c0_i32_0 = arith.constant 0 : i32
    %c0_i32_1 = arith.constant 0 : i32
    return %arg0, %c0_i32, %c0_i32_0 : i32, i32, i32
  }
  func.func @transform_1(%arg0: i32) -> (i32, i32, i32) {
    %c0_i32 = arith.constant 0 : i32
    %c0_i32_0 = arith.constant 0 : i32
    %c0_i32_1 = arith.constant 0 : i32
    %c0_i32_2 = arith.constant 0 : i32
    return %c0_i32, %c0_i32_0, %c0_i32_1 : i32, i32, i32
  }
  func.func @transform_2(%arg0: i32) -> (i32, i32) {
    %c0_i32 = arith.constant 0 : i32
    %c0_i32_0 = arith.constant 0 : i32
    %c0_i32_1 = arith.constant 0 : i32
    return %c0_i32, %c0_i32_0 : i32, i32
  }
  func.func @transform_3(%arg0: i32) -> (i32, i32, i32) {
    %c0_i32 = arith.constant 0 : i32
    %c0_i32_0 = arith.constant 0 : i32
    %c0_i32_1 = arith.constant 0 : i32
    %c0_i32_2 = arith.constant 0 : i32
    return %c0_i32, %c0_i32_0, %c0_i32_1 : i32, i32, i32
  }
  func.func @transform_4(%arg0: i32) -> (i32, i32) {
    %c0_i32 = arith.constant 0 : i32
    %c0_i32_0 = arith.constant 0 : i32
    %c0_i32_1 = arith.constant 0 : i32
    return %c0_i32, %c0_i32_0 : i32, i32
  }
  func.func @transform_5(%arg0: i32) -> (i32, i32, i32) {
    %c0_i32 = arith.constant 0 : i32
    %c0_i32_0 = arith.constant 0 : i32
    %c0_i32_1 = arith.constant 0 : i32
    %c0_i32_2 = arith.constant 0 : i32
    return %c0_i32, %c0_i32_0, %c0_i32_1 : i32, i32, i32
  }
  func.func @transform_6(%arg0: i32) -> (i32, i32) {
    %c0_i32 = arith.constant 0 : i32
    %c0_i32_0 = arith.constant 0 : i32
    %c0_i32_1 = arith.constant 0 : i32
    return %c0_i32, %c0_i32_0 : i32, i32
  }
  func.func @transform_7(%arg0: i32) -> (i32, i32, i32) {
    %c0_i32 = arith.constant 0 : i32
    %c0_i32_0 = arith.constant 0 : i32
    %c0_i32_1 = arith.constant 0 : i32
    return %arg0, %c0_i32, %c0_i32_0 : i32, i32, i32
  }
}

</mosaic_0001>

<llo_original>
// kernel: tile.18
$region0: #{tile.18}
  #allocation0 [shape = 's32[1]{0}', space=sflag, size = 0x4, scoped, tag = 'scoped memory for tile.18']
  %s0 = inlined_call_operand.vmem [shape: f32[8], index: 0, kind: input, shape index: {}]
  %s1 = inlined_call_operand.vmem [shape: f32[16,8], index: 1, kind: output, shape index: {}]
  // Predicated region
  $region2: #{tile.18} parent=0 // pred_check
    _
  $region3: #{tile.18} parent=0 // pred_check_branch
    %3 = sbr.rel (0) target = $region5
  $region4: #{tile.18} parent=0 // pred_region
    _
  $region5: #{tile.18} parent=0 // pred_fallthru
    _
  %v4 = vld [vmem:[%s0] ss:$0 sm:$0xff]
  %5 = vst [vmem:[%s1] sm:$0xff] %v4
  %s6 = scalar_lea.vmem %s1, 8
  %7 = vst [vmem:[%s6] sm:$0xff] %v4

// kernel: tile.19
$region0: #{tile.19}
  %s0 = inlined_call_operand.vmem [shape: f32[16,8], index: 0, kind: input, shape index: {}]
  %s1 = inlined_call_operand.vmem [shape: f32[1,128], index: 1, kind: output, shape index: {}]
  $region1: #{tile.19} parent=0
    #allocation0 [shape = 'u8[4096]{0}', space=vmem, size = 0x1000, scoped, tag = 'scoped mem for output reshape']
    %v2 = vld [vmem:[%s0] sm:$0x1]
    %vm3 = vcmask 64512
    %4 = vst.msk [vmem:[#allocation0] sm:$0x1] %vm3, %v2
    %s5 = scalar_lea.vmem %s0, 15
    %v6 = vld [vmem:[%s5] sm:$0x1]
    %7 = vrot.lane.b32.xlu0 %v6, 120
    %v8 = vpop.permute.xlu0 %7
    %vm9 = vcmask 1048512
    %10 = vst.msk [vmem:[#allocation0] sm:$0x1] %vm9, %v8
    %s11 = scalar_lea.vmem %s0, 14
    %v12 = vld [vmem:[%s11] sm:$0x1]
    %13 = vrot.lane.b32.xlu0 %v12, 112
    %v14 = vpop.permute.xlu0 %13
    %vm15 = vcmask 982912
    %16 = vst.msk [vmem:[#allocation0] sm:$0x1] %vm15, %v14
    %s17 = scalar_lea.vmem %s0, 13
    %v18 = vld [vmem:[%s17] sm:$0x1]
    %19 = vrot.lane.b32.xlu0 %v18, 104
    %v20 = vpop.permute.xlu0 %19
    %vm21 = vcmask 917312
    %22 = vst.msk [vmem:[#allocation0] sm:$0x1] %vm21, %v20
    %s23 = scalar_lea.vmem %s0, 12
    %v24 = vld [vmem:[%s23] sm:$0x1]
    %25 = vrot.lane.b32.xlu0 %v24, 96
    %v26 = vpop.permute.xlu0 %25
    %vm27 = vcmask 851712
    %28 = vst.msk [vmem:[#allocation0] sm:$0x1] %vm27, %v26
    %s29 = scalar_lea.vmem %s0, 11
    %v30 = vld [vmem:[%s29] sm:$0x1]
    %31 = vrot.lane.b32.xlu0 %v30, 88
    %v32 = vpop.permute.xlu0 %31
    %vm33 = vcmask 786112
    %34 = vst.msk [vmem:[#allocation0] sm:$0x1] %vm33, %v32
    %s35 = scalar_lea.vmem %s0, 10
    %v36 = vld [vmem:[%s35] sm:$0x1]
    %37 = vrot.lane.b32.xlu0 %v36, 80
    %v38 = vpop.permute.xlu0 %37
    %vm39 = vcmask 720512
    %40 = vst.msk [vmem:[#allocation0] sm:$0x1] %vm39, %v38
    %s41 = scalar_lea.vmem %s0, 9
    %v42 = vld [vmem:[%s41] sm:$0x1]
    %43 = vrot.lane.b32.xlu0 %v42, 72
    %v44 = vpop.permute.xlu0 %43
    %vm45 = vcmask 654912
    %46 = vst.msk [vmem:[#allocation0] sm:$0x1] %vm45, %v44
    %s47 = scalar_lea.vmem %s0, 8
    %v48 = vld [vmem:[%s47] sm:$0x1]
    %49 = vrot.lane.b32.xlu0 %v48, 64
    %v50 = vpop.permute.xlu0 %49
    %vm51 = vcmask 589312
    %52 = vst.msk [vmem:[#allocation0] sm:$0x1] %vm51, %v50
    %s53 = scalar_lea.vmem %s0, 7
    %v54 = vld [vmem:[%s53] sm:$0x1]
    %55 = vrot.lane.b32.xlu0 %v54, 56
    %v56 = vpop.permute.xlu0 %55
    %vm57 = vcmask 523712
    %58 = vst.msk [vmem:[#allocation0] sm:$0x1] %vm57, %v56
    %s59 = scalar_lea.vmem %s0, 6
    %v60 = vld [vmem:[%s59] sm:$0x1]
    %61 = vrot.lane.b32.xlu0 %v60, 48
    %v62 = vpop.permute.xlu0 %61
    %vm63 = vcmask 458112
    %64 = vst.msk [vmem:[#allocation0] sm:$0x1] %vm63, %v62
    %s65 = scalar_lea.vmem %s0, 5
    %v66 = vld [vmem:[%s65] sm:$0x1]
    %67 = vrot.lane.b32.xlu0 %v66, 40
    %v68 = vpop.permute.xlu0 %67
    %vm69 = vcmask 392512
    %70 = vst.msk [vmem:[#allocation0] sm:$0x1] %vm69, %v68
    %s71 = scalar_lea.vmem %s0, 4
    %v72 = vld [vmem:[%s71] sm:$0x1]
    %73 = vrot.lane.b32.xlu0 %v72, 32
    %v74 = vpop.permute.xlu0 %73
    %vm75 = vcmask 326912
    %76 = vst.msk [vmem:[#allocation0] sm:$0x1] %vm75, %v74
    %s77 = scalar_lea.vmem %s0, 3
    %v78 = vld [vmem:[%s77] sm:$0x1]
    %79 = vrot.lane.b32.xlu0 %v78, 24
    %v80 = vpop.permute.xlu0 %79
    %vm81 = vcmask 261312
    %82 = vst.msk [vmem:[#allocation0] sm:$0x1] %vm81, %v80
    %s83 = scalar_lea.vmem %s0, 2
    %v84 = vld [vmem:[%s83] sm:$0x1]
    %85 = vrot.lane.b32.xlu0 %v84, 16
    %v86 = vpop.permute.xlu0 %85
    %vm87 = vcmask 195712
    %88 = vst.msk [vmem:[#allocation0] sm:$0x1] %vm87, %v86
    %s89 = scalar_lea.vmem %s0, 1
    %v90 = vld [vmem:[%s89] sm:$0x1]
    %91 = vrot.lane.b32.xlu0 %v90, 8
    %v92 = vpop.permute.xlu0 %91
    %vm93 = vcmask 130112
    %94 = vst.msk [vmem:[#allocation0] sm:$0x1] %vm93, %v92
    %s96 = sshllo.u32 0, 1
    %v98 = vld [vmem:[#allocation0] sm:%s96]
    %s99 = sshllo.u32 0, 1
    %100 = vst [vmem:[%s1] sm:%s99] %v98

// kernel: conv_layer_3_forward.1
$region0: #{conv_layer_3_forward.1}
  #allocation0 [shape = 'u32[]', space=smem, size = 0x4, offset = 0x4, fixed_abs, tag = 'smem constant byte address 0x4 - core index']
  #allocation1 [shape = 'u32[144,128]{1,0:T(1,128)}', space=vmem, size = 0x12000, scoped, tag = 'internal scratch']
  %s0 = inlined_call_operand.vmem [shape: f32[2,16,64], index: 0, kind: input, shape index: {}]
  %s1 = inlined_call_operand.vmem [shape: bf16[3,64,128], index: 1, kind: input, shape index: {}]
  %s2 = inlined_call_operand.vmem [shape: f32[1,128], index: 2, kind: input, shape index: {}]
  %s3 = inlined_call_operand.vmem [shape: bf16[3,128,128], index: 3, kind: input, shape index: {}]
  %s4 = inlined_call_operand.vmem [shape: f32[1,128], index: 4, kind: input, shape index: {}]
  %s5 = inlined_call_operand.vmem [shape: bf16[3,128,128], index: 5, kind: input, shape index: {}]
  %s6 = inlined_call_operand.vmem [shape: f32[1,128], index: 6, kind: input, shape index: {}]
  %s7 = inlined_call_operand.vmem [shape: f32[2,16,128], index: 7, kind: output, shape index: {}]
  %s8 = sld [smem:[#allocation0]]
  $region61: #{conv_layer_3_forward.1} parent=0
    _
  %s10 = ssub.s32 1, %s8
  %s11 = scalar_select 0, %s10, %s8
  loop: start=0, step=1, limit=4
  $region2: #{conv_layer_3_forward.1} parent=0 // loop_pre_header
    _
  $region3: #{conv_layer_3_forward.1} parent=0 // loop_header
    %s13 = sphi 0, %s17
    %p14 = scmp.ge.s32.totalorder %s13, 4
    %s23 = sphi 0, %s25
    %s26 = sphi 0, %s23
    %s27 = sphi 0, %s26
    %s43 = sphi 0, %s27
    %s47 = sphi 0, %s47
    %s49 = sphi 0, %s47
    %s50 = sphi 0, %s49
    %s64 = sphi 0, %s50
    %s68 = sphi 0, %s68
    %s70 = sphi 0, %s68
    %s71 = sphi 0, %s70
    %s85 = sphi 0, %s71
    %s89 = sphi 0, %s89
    %s91 = sphi 0, %s89
    %s92 = sphi 0, %s91
    %s106 = sphi 0, %s92
    %s110 = sphi 0, %s110
    %s112 = sphi 0, %s110
    %s113 = sphi 0, %s112
    %s127 = sphi 0, %s113
    %s131 = sphi 0, %s131
    %s133 = sphi 0, %s131
    %s134 = sphi 0, %s133
    %s148 = sphi 0, %s134
    %s152 = sphi 0, %s152
    %s154 = sphi 0, %s152
    %s155 = sphi 0, %s154
    %s169 = sphi 0, %s155
    %s175 = sphi 0, %s177
    %s178 = sphi 0, %s175
    %s179 = sphi 0, %s178
    %s195 = sphi 0, %s179
  $region4: #{conv_layer_3_forward.1} parent=0 // loop_header_branch
    %16 = sbr.rel (%p14) target = $region8
  $region5: #{conv_layer_3_forward.1} parent=0 // loop_body
    %s18 = ssub.s32 %s13, 1
    %s19 = ssub.s32 %s13, 2
    %s20 = sadd.s32 %s13, 1
    %s21 = ssub.s32 %s13, %s20
    %p22 = scmp.eq.s32.totalorder %s21, 0
    %s24 = sadd.s32 %s23, 1
    %s25 = scalar_select %p22, %s23, %s24
    %p28 = pneg %p22
    %p29 = scmp.eq.s32.totalorder %s13, 1
    %p30 = por %p28, %p29
    %p31 = scmp.ne.s32.totalorder %s23, %s26
    %p32 = scmp.eq.s32.totalorder %s13, 0
    %p33 = por %p31, %p32
    %p34 = scmp.ne.s32.totalorder %s23, %s26
    %p35 = scmp.eq.s32.totalorder %s18, 1
    %p36 = por %p34, %p35
    %p37 = scmp.ne.s32.totalorder %s26, %s27
    %p38 = scmp.eq.s32.totalorder %s18, 0
    %p39 = por %p37, %p38
    %p40 = scmp.ne.s32.totalorder %s26, %s27
    %p41 = scmp.eq.s32.totalorder %s19, 1
    %p42 = por %p40, %p41
    %p44 = scmp.ne.s32.totalorder %s27, %s43
    %p45 = scmp.eq.s32.totalorder %s19, 0
    %p46 = por %p44, %p45
    %s48 = sadd.s32 %s47, 1
    %p51 = scmp.eq.s32.totalorder %s13, 1
    %p52 = scmp.ne.s32.totalorder %s47, %s49
    %p53 = scmp.eq.s32.totalorder %s13, 0
    %p54 = por %p52, %p53
    %p55 = scmp.ne.s32.totalorder %s47, %s49
    %p56 = scmp.eq.s32.totalorder %s18, 1
    %p57 = por %p55, %p56
    %p58 = scmp.ne.s32.totalorder %s49, %s50
    %p59 = scmp.eq.s32.totalorder %s18, 0
    %p60 = por %p58, %p59
    %p61 = scmp.ne.s32.totalorder %s49, %s50
    %p62 = scmp.eq.s32.totalorder %s19, 1
    %p63 = por %p61, %p62
    %p65 = scmp.ne.s32.totalorder %s50, %s64
    %p66 = scmp.eq.s32.totalorder %s19, 0
    %p67 = por %p65, %p66
    %s69 = sadd.s32 %s68, 1
    %p72 = scmp.eq.s32.totalorder %s13, 1
    %p73 = scmp.ne.s32.totalorder %s68, %s70
    %p74 = scmp.eq.s32.totalorder %s13, 0
    %p75 = por %p73, %p74
    %p76 = scmp.ne.s32.totalorder %s68, %s70
    %p77 = scmp.eq.s32.totalorder %s18, 1
    %p78 = por %p76, %p77
    %p79 = scmp.ne.s32.totalorder %s70, %s71
    %p80 = scmp.eq.s32.totalorder %s18, 0
    %p81 = por %p79, %p80
    %p82 = scmp.ne.s32.totalorder %s70, %s71
    %p83 = scmp.eq.s32.totalorder %s19, 1
    %p84 = por %p82, %p83
    %p86 = scmp.ne.s32.totalorder %s71, %s85
    %p87 = scmp.eq.s32.totalorder %s19, 0
    %p88 = por %p86, %p87
    %s90 = sadd.s32 %s89, 1
    %p93 = scmp.eq.s32.totalorder %s13, 1
    %p94 = scmp.ne.s32.totalorder %s89, %s91
    %p95 = scmp.eq.s32.totalorder %s13, 0
    %p96 = por %p94, %p95
    %p97 = scmp.ne.s32.totalorder %s89, %s91
    %p98 = scmp.eq.s32.totalorder %s18, 1
    %p99 = por %p97, %p98
    %p100 = scmp.ne.s32.totalorder %s91, %s92
    %p101 = scmp.eq.s32.totalorder %s18, 0
    %p102 = por %p100, %p101
    %p103 = scmp.ne.s32.totalorder %s91, %s92
    %p104 = scmp.eq.s32.totalorder %s19, 1
    %p105 = por %p103, %p104
    %p107 = scmp.ne.s32.totalorder %s92, %s106
    %p108 = scmp.eq.s32.totalorder %s19, 0
    %p109 = por %p107, %p108
    %s111 = sadd.s32 %s110, 1
    %p114 = scmp.eq.s32.totalorder %s13, 1
    %p115 = scmp.ne.s32.totalorder %s110, %s112
    %p116 = scmp.eq.s32.totalorder %s13, 0
    %p117 = por %p115, %p116
    %p118 = scmp.ne.s32.totalorder %s110, %s112
    %p119 = scmp.eq.s32.totalorder %s18, 1
    %p120 = por %p118, %p119
    %p121 = scmp.ne.s32.totalorder %s112, %s113
    %p122 = scmp.eq.s32.totalorder %s18, 0
    %p123 = por %p121, %p122
    %p124 = scmp.ne.s32.totalorder %s112, %s113
    %p125 = scmp.eq.s32.totalorder %s19, 1
    %p126 = por %p124, %p125
    %p128 = scmp.ne.s32.totalorder %s113, %s127
    %p129 = scmp.eq.s32.totalorder %s19, 0
    %p130 = por %p128, %p129
    %s132 = sadd.s32 %s131, 1
    %p135 = scmp.eq.s32.totalorder %s13, 1
    %p136 = scmp.ne.s32.totalorder %s131, %s133
    %p137 = scmp.eq.s32.totalorder %s13, 0
    %p138 = por %p136, %p137
    %p139 = scmp.ne.s32.totalorder %s131, %s133
    %p140 = scmp.eq.s32.totalorder %s18, 1
    %p141 = por %p139, %p140
    %p142 = scmp.ne.s32.totalorder %s133, %s134
    %p143 = scmp.eq.s32.totalorder %s18, 0
    %p144 = por %p142, %p143
    %p145 = scmp.ne.s32.totalorder %s133, %s134
    %p146 = scmp.eq.s32.totalorder %s19, 1
    %p147 = por %p145, %p146
    %p149 = scmp.ne.s32.totalorder %s134, %s148
    %p150 = scmp.eq.s32.totalorder %s19, 0
    %p151 = por %p149, %p150
    %s153 = sadd.s32 %s152, 1
    %p156 = scmp.eq.s32.totalorder %s13, 1
    %p157 = scmp.ne.s32.totalorder %s152, %s154
    %p158 = scmp.eq.s32.totalorder %s13, 0
    %p159 = por %p157, %p158
    %p160 = scmp.ne.s32.totalorder %s152, %s154
    %p161 = scmp.eq.s32.totalorder %s18, 1
    %p162 = por %p160, %p161
    %p163 = scmp.ne.s32.totalorder %s154, %s155
    %p164 = scmp.eq.s32.totalorder %s18, 0
    %p165 = por %p163, %p164
    %p166 = scmp.ne.s32.totalorder %s154, %s155
    %p167 = scmp.eq.s32.totalorder %s19, 1
    %p168 = por %p166, %p167
    %p170 = scmp.ne.s32.totalorder %s155, %s169
    %p171 = scmp.eq.s32.totalorder %s19, 0
    %p172 = por %p170, %p171
    %s173 = ssub.s32 %s13, %s20
    %p174 = scmp.eq.s32.totalorder %s173, 0
    %s176 = sadd.s32 %s175, 1
    %s177 = scalar_select %p174, %s175, %s176
    %p180 = pneg %p174
    %p181 = scmp.eq.s32.totalorder %s13, 1
    %p182 = por %p180, %p181
    %p183 = scmp.ne.s32.totalorder %s175, %s178
    %p184 = scmp.eq.s32.totalorder %s13, 0
    %p185 = por %p183, %p184
    %p186 = scmp.ne.s32.totalorder %s175, %s178
    %p187 = scmp.eq.s32.totalorder %s18, 1
    %p188 = por %p186, %p187
    %p189 = scmp.ne.s32.totalorder %s178, %s179
    %p190 = scmp.eq.s32.totalorder %s18, 0
    %p191 = por %p189, %p190
    %p192 = scmp.ne.s32.totalorder %s178, %s179
    %p193 = scmp.eq.s32.totalorder %s19, 1
    %p194 = por %p192, %p193
    %p196 = scmp.ne.s32.totalorder %s179, %s195
    %p197 = scmp.eq.s32.totalorder %s19, 0
    %p198 = por %p196, %p197
    %p199 = scmp.le.s32.totalorder 1, %s13
    %p200 = scmp.lt.s32.totalorder %s13, 3
    %p201 = pnand %p199, %p200
    %p202 = pneg %p201
    // Predicated region
    $region9: #{conv_layer_3_forward.1} parent=5 // pred_check
      _
    $region10: #{conv_layer_3_forward.1} parent=5 // pred_check_branch
      %204 = sbr.rel (%p201) target = $region12
    $region11: #{conv_layer_3_forward.1} parent=5 // pred_region
      %s205 = ssub.s32 %s13, 1
      // Predicated region
      $region13: #{conv_layer_3_forward.1} parent=11 // pred_check
        %p206 = pneg %p60
      $region14: #{conv_layer_3_forward.1} parent=11 // pred_check_branch
        %208 = sbr.rel (%p206) target = $region16
      $region15: #{conv_layer_3_forward.1} parent=11 // pred_region
        _
      $region16: #{conv_layer_3_forward.1} parent=11 // pred_fallthru
        _
      // Predicated region
      $region17: #{conv_layer_3_forward.1} parent=11 // pred_check
        %p209 = pneg %p81
      $region18: #{conv_layer_3_forward.1} parent=11 // pred_check_branch
        %211 = sbr.rel (%p209) target = $region20
      $region19: #{conv_layer_3_forward.1} parent=11 // pred_region
        _
      $region20: #{conv_layer_3_forward.1} parent=11 // pred_fallthru
        _
      // Predicated region
      $region21: #{conv_layer_3_forward.1} parent=11 // pred_check
        %p212 = pneg %p102
      $region22: #{conv_layer_3_forward.1} parent=11 // pred_check_branch
        %214 = sbr.rel (%p212) target = $region24
      $region23: #{conv_layer_3_forward.1} parent=11 // pred_region
        _
      $region24: #{conv_layer_3_forward.1} parent=11 // pred_fallthru
        _
      // Predicated region
      $region25: #{conv_layer_3_forward.1} parent=11 // pred_check
        %p215 = pneg %p123
      $region26: #{conv_layer_3_forward.1} parent=11 // pred_check_branch
        %217 = sbr.rel (%p215) target = $region28
      $region27: #{conv_layer_3_forward.1} parent=11 // pred_region
        _
      $region28: #{conv_layer_3_forward.1} parent=11 // pred_fallthru
        _
      // Predicated region
      $region29: #{conv_layer_3_forward.1} parent=11 // pred_check
        %p218 = pneg %p144
      $region30: #{conv_layer_3_forward.1} parent=11 // pred_check_branch
        %220 = sbr.rel (%p218) target = $region32
      $region31: #{conv_layer_3_forward.1} parent=11 // pred_region
        _
      $region32: #{conv_layer_3_forward.1} parent=11 // pred_fallthru
        _
      // Predicated region
      $region33: #{conv_layer_3_forward.1} parent=11 // pred_check
        %p221 = pneg %p165
      $region34: #{conv_layer_3_forward.1} parent=11 // pred_check_branch
        %223 = sbr.rel (%p221) target = $region36
      $region35: #{conv_layer_3_forward.1} parent=11 // pred_region
        _
      $region36: #{conv_layer_3_forward.1} parent=11 // pred_fallthru
        _
    $region12: #{conv_layer_3_forward.1} parent=5 // pred_fallthru
      _
    %p224 = scmp.lt.s32.totalorder %s13, 2
    // Predicated region
    $region37: #{conv_layer_3_forward.1} parent=5 // pred_check
      %p225 = pneg %p224
    $region38: #{conv_layer_3_forward.1} parent=5 // pred_check_branch
      %227 = sbr.rel (%p225) target = $region40
    $region39: #{conv_layer_3_forward.1} parent=5 // pred_region
      // Predicated region
      $region41: #{conv_layer_3_forward.1} parent=39 // pred_check
        %p228 = pneg %p33
      $region42: #{conv_layer_3_forward.1} parent=39 // pred_check_branch
        %230 = sbr.rel (%p228) target = $region44
      $region43: #{conv_layer_3_forward.1} parent=39 // pred_region
        %p231 = scmp.lt.s32.totalorder %s13, 1
        %s232 = scalar_select %p231, %s13, 1
        %s233 = smul.addr %s232, 2
        %s234 = smul.addr %s233, 8
        %s235 = scalar_lea.vmem %s0, %s234
      $region44: #{conv_layer_3_forward.1} parent=39 // pred_fallthru
        _
    $region40: #{conv_layer_3_forward.1} parent=5 // pred_fallthru
      _
    %p236 = scmp.le.s32.totalorder 1, %s13
    %p237 = scmp.lt.s32.totalorder %s13, 3
    %p238 = pnand %p236, %p237
    %p239 = pneg %p238
    // Predicated region
    $region45: #{conv_layer_3_forward.1} parent=5 // pred_check
      _
    $region46: #{conv_layer_3_forward.1} parent=5 // pred_check_branch
      %241 = sbr.rel (%p238) target = $region48
    $region47: #{conv_layer_3_forward.1} parent=5 // pred_region
      %s242 = ssub.s32 %s13, 1
      %p243 = scmp.lt.s32.totalorder %s18, 1
      %s244 = scalar_select %p243, %s18, 1
      %s245 = smul.addr %s244, 2
      %s246 = smul.addr %s245, 8
      %s247 = scalar_lea.vmem %s0, %s246
      %p248 = pneg %p39
      %p249 = pneg %p36
      %p250 = pneg %p60
      %p251 = pneg %p57
      %p252 = pneg %p81
      %p253 = pneg %p78
      %p254 = pneg %p102
      %p255 = pneg %p99
      %p256 = pneg %p123
      %p257 = pneg %p120
      %p258 = pneg %p144
      %p259 = pneg %p141
      %p260 = pneg %p165
      %p261 = pneg %p162
      %p262 = pneg %p191
      %p263 = pneg %p188
      %p264 = scmp.lt.s32.totalorder %s18, 1
      %s265 = scalar_select %p264, %s18, 1
      %s266 = smul.addr %s265, 2
      %s267 = smul.addr %s266, 8
      %s268 = scalar_lea.vmem %s7, %s267
      %p269 = scmp.lt.s32.totalorder %s18, 1
      %s270 = scalar_select %p269, %s18, 1
      %s271 = smul.addr %s270, 2
      %s272 = smul.addr %s271, 8
      %s273 = scalar_lea.vmem %s0, %s272
      %p274 = scmp.lt.s32.totalorder %s18, 1
      %s275 = scalar_select %p274, %s18, 1
      %s276 = smul.addr %s275, 2
      %s277 = smul.addr %s276, 8
      %s278 = scalar_lea.vmem %s7, %s277
      %v280 = vld [vmem:[%s273] sm:$0xff]
      %v281 = vld [vmem:[%s273 + $0x8] sm:$0xff]
      %v282 = vlaneseq
      %v283 = vshrl.u32 %v282, 7
      %v284 = vadd.s32 %v283, 8
      %vm285 = vcmp.eq.s32.totalorder %v283, 0
      %vm286 = vcmp.eq.s32.totalorder %v284, 0
      %v287 = vrot.slane %v280, 7
      %v288 = vrot.slane %v281, 7
      %vm289 = vcmp.lt.s32.totalorder %v283, 1
      %v290 = vsel %vm289, %v287, %v288
      %v291 = vsel %vm289, %v288, %v287
      %v292 = vsel %vm285, 0.0, %v291
      %v293 = vsel %vm286, 0.0, %v290
      %vm294 = vcmp.eq.s32.totalorder %v283, 15
      %vm295 = vcmp.eq.s32.totalorder %v284, 15
      %v296 = vrot.slane %v280, 1
      %v297 = vrot.slane %v281, 1
      %vm298 = vcmp.lt.s32.totalorder %v283, 7
      %v299 = vsel %vm298, %v296, %v297
      %v300 = vsel %vm298, %v297, %v296
      %v301 = vsel %vm294, 0.0, %v299
      %v302 = vsel %vm295, 0.0, %v300
      %v303 = vpack.c.bf16 %v293, %v292
      %v304 = vld [vmem:[%s1] sm:$0xf]
      %v305 = vld [vmem:[%s1 + $0x4] sm:$0xf]
      %v306 = vld [vmem:[%s1 + $0x8] sm:$0xf]
      %v307 = vld [vmem:[%s1 + $0xc] sm:$0xf]
      %v308 = vld [vmem:[%s1 + $0x10] sm:$0xf]
      %v309 = vld [vmem:[%s1 + $0x14] sm:$0xf]
      %v310 = vld [vmem:[%s1 + $0x18] sm:$0xf]
      %v311 = vld [vmem:[%s1 + $0x1c] sm:$0xf]
      %v312 = vpack.c.bf16 %v281, %v280
      %s313 = scalar_lea.vmem %s1, 32
      %v314 = vld [vmem:[%s313] sm:$0xf]
      %v315 = vld [vmem:[%s313 + $0x4] sm:$0xf]
      %v316 = vld [vmem:[%s313 + $0x8] sm:$0xf]
      %v317 = vld [vmem:[%s313 + $0xc] sm:$0xf]
      %v318 = vld [vmem:[%s313 + $0x10] sm:$0xf]
      %v319 = vld [vmem:[%s313 + $0x14] sm:$0xf]
      %v320 = vld [vmem:[%s313 + $0x18] sm:$0xf]
      %v321 = vld [vmem:[%s313 + $0x1c] sm:$0xf]
      %v330 = vunpack.c.l.b16 %v314
      %v331 = vunpack.c.l.b16 %v315
      %v332 = vunpack.c.l.b16 %v316
      %v333 = vunpack.c.l.b16 %v317
      %v334 = vunpack.c.l.b16 %v318
      %v335 = vunpack.c.l.b16 %v319
      %v336 = vunpack.c.l.b16 %v320
      %v337 = vunpack.c.l.b16 %v321
      %v338 = vpack.c.b16 %v331, %v330
      %v339 = vpack.c.b16 %v333, %v332
      %v340 = vpack.c.b16 %v335, %v334
      %v341 = vpack.c.b16 %v337, %v336
      %vm346 = vcmask 523264
      %v348 = vsel %vm346, %v312, 0
      %350 = vmatprep.subr.bf16.mxu0 0
      %351 = vmatpush1.bf16.msra.mxu0 %v338
      %352 = vmatprep.subr.bf16.mxu0 0
      %353 = vmatpush1.bf16.msra.mxu0 %v339
      %354 = vmatprep.subr.bf16.mxu0 0
      %355 = vmatpush1.bf16.msra.mxu0 %v340
      %356 = vmatprep.subr.bf16.mxu0 0
      %357 = vmatpush1.bf16.msra.mxu0 %v341
      %358 = vmatprep.subr.bf16.mxu0 0
      %359 = vmatpush1.bf16.msra.mxu0 0
      %360 = vmatprep.subr.bf16.mxu0 0
      %361 = vmatpush1.bf16.msra.mxu0 0
      %362 = vmatprep.subr.bf16.mxu0 0
      %363 = vmatpush1.bf16.msra.mxu0 0
      %364 = vmatprep.subr.bf16.mxu0 0
      %365 = vmatpush1.bf16.msra.mxu0 0
      %366 = vmatprep.subr.bf16.mxu0 0
      %367 = vmatpush1.bf16.msra.mxu0 0
      %368 = vmatprep.subr.bf16.mxu0 0
      %369 = vmatpush1.bf16.msra.mxu0 0
      %370 = vmatprep.subr.bf16.mxu0 0
      %371 = vmatpush1.bf16.msra.mxu0 0
      %372 = vmatprep.subr.bf16.mxu0 0
      %373 = vmatpush1.bf16.msra.mxu0 0
      %374 = vmatprep.subr.bf16.mxu0 0
      %375 = vmatpush1.bf16.msra.mxu0 0
      %376 = vmatprep.subr.bf16.mxu0 0
      %377 = vmatpush1.bf16.msra.mxu0 0
      %378 = vmatprep.subr.bf16.mxu0 0
      %379 = vmatpush1.bf16.msra.mxu0 0
      %380 = vmatprep.subr.bf16.mxu0 0
      %381 = vmatpush1.bf16.msra.mxu0 0
      %382 = vmatprep.mubr.bf16.mxu0 0
      %383 = vmatmul.mubr.bf16.gmra.mrb[0].mxu0 %v348
      %v384 = vpop.f32.mrb[0].mxu0
      %v385 = vadd.f32 0.0, %v384
      %v386 = vpop.f32.mrb[0].mxu0
      %v387 = vpop.f32.mrb[0].mxu0
      %v388 = vadd.f32 0.0, %v387
      %v389 = vpop.f32.mrb[0].mxu0
      %390 = vdwg.mxu0
      %v399 = vunpack.c.l.b16 %v304
      %v400 = vunpack.c.l.b16 %v305
      %v401 = vunpack.c.l.b16 %v306
      %v402 = vunpack.c.l.b16 %v307
      %v403 = vunpack.c.l.b16 %v308
      %v404 = vunpack.c.l.b16 %v309
      %v405 = vunpack.c.l.b16 %v310
      %v406 = vunpack.c.l.b16 %v311
      %v407 = vpack.c.b16 %v400, %v399
      %v408 = vpack.c.b16 %v402, %v401
      %v409 = vpack.c.b16 %v404, %v403
      %v410 = vpack.c.b16 %v406, %v405
      %v416 = vsel %vm346, %v303, 0
      %418 = vmatprep.subr.bf16.mxu0 0
      %419 = vmatpush1.bf16.msra.mxu0 %v407
      %420 = vmatprep.subr.bf16.mxu0 0
      %421 = vmatpush1.bf16.msra.mxu0 %v408
      %422 = vmatprep.subr.bf16.mxu0 0
      %423 = vmatpush1.bf16.msra.mxu0 %v409
      %424 = vmatprep.subr.bf16.mxu0 0
      %425 = vmatpush1.bf16.msra.mxu0 %v410
      %426 = vmatprep.subr.bf16.mxu0 0
      %427 = vmatpush1.bf16.msra.mxu0 0
      %428 = vmatprep.subr.bf16.mxu0 0
      %429 = vmatpush1.bf16.msra.mxu0 0
      %430 = vmatprep.subr.bf16.mxu0 0
      %431 = vmatpush1.bf16.msra.mxu0 0
      %432 = vmatprep.subr.bf16.mxu0 0
      %433 = vmatpush1.bf16.msra.mxu0 0
      %434 = vmatprep.subr.bf16.mxu0 0
      %435 = vmatpush1.bf16.msra.mxu0 0
      %436 = vmatprep.subr.bf16.mxu0 0
      %437 = vmatpush1.bf16.msra.mxu0 0
      %438 = vmatprep.subr.bf16.mxu0 0
      %439 = vmatpush1.bf16.msra.mxu0 0
      %440 = vmatprep.subr.bf16.mxu0 0
      %441 = vmatpush1.bf16.msra.mxu0 0
      %442 = vmatprep.subr.bf16.mxu0 0
      %443 = vmatpush1.bf16.msra.mxu0 0
      %444 = vmatprep.subr.bf16.mxu0 0
      %445 = vmatpush1.bf16.msra.mxu0 0
      %446 = vmatprep.subr.bf16.mxu0 0
      %447 = vmatpush1.bf16.msra.mxu0 0
      %448 = vmatprep.subr.bf16.mxu0 0
      %449 = vmatpush1.bf16.msra.mxu0 0
      %450 = vmatprep.mubr.bf16.mxu0 0
      %451 = vmatmul.mubr.bf16.gmra.mrb[0].mxu0 %v416
      %v452 = vpop.f32.mrb[0].mxu0
      %v453 = vadd.f32 %v385, %v452
      %v454 = vpop.f32.mrb[0].mxu0
      %v455 = vpop.f32.mrb[0].mxu0
      %v456 = vadd.f32 %v388, %v455
      %v457 = vpop.f32.mrb[0].mxu0
      %458 = vdwg.mxu0
      %v459 = vpack.c.bf16 %v302, %v301
      %s460 = scalar_lea.vmem %s1, 64
      %v461 = vld [vmem:[%s460] sm:$0xf]
      %v462 = vld [vmem:[%s460 + $0x4] sm:$0xf]
      %v463 = vld [vmem:[%s460 + $0x8] sm:$0xf]
      %v464 = vld [vmem:[%s460 + $0xc] sm:$0xf]
      %v465 = vld [vmem:[%s460 + $0x10] sm:$0xf]
      %v466 = vld [vmem:[%s460 + $0x14] sm:$0xf]
      %v467 = vld [vmem:[%s460 + $0x18] sm:$0xf]
      %v468 = vld [vmem:[%s460 + $0x1c] sm:$0xf]
      %v477 = vunpack.c.l.b16 %v461
      %v478 = vunpack.c.l.b16 %v462
      %v479 = vunpack.c.l.b16 %v463
      %v480 = vunpack.c.l.b16 %v464
      %v481 = vunpack.c.l.b16 %v465
      %v482 = vunpack.c.l.b16 %v466
      %v483 = vunpack.c.l.b16 %v467
      %v484 = vunpack.c.l.b16 %v468
      %v485 = vpack.c.b16 %v478, %v477
      %v486 = vpack.c.b16 %v480, %v479
      %v487 = vpack.c.b16 %v482, %v481
      %v488 = vpack.c.b16 %v484, %v483
      %v494 = vsel %vm346, %v459, 0
      %496 = vmatprep.subr.bf16.mxu0 0
      %497 = vmatpush1.bf16.msra.mxu0 %v485
      %498 = vmatprep.subr.bf16.mxu0 0
      %499 = vmatpush1.bf16.msra.mxu0 %v486
      %500 = vmatprep.subr.bf16.mxu0 0
      %501 = vmatpush1.bf16.msra.mxu0 %v487
      %502 = vmatprep.subr.bf16.mxu0 0
      %503 = vmatpush1.bf16.msra.mxu0 %v488
      %504 = vmatprep.subr.bf16.mxu0 0
      %505 = vmatpush1.bf16.msra.mxu0 0
      %506 = vmatprep.subr.bf16.mxu0 0
      %507 = vmatpush1.bf16.msra.mxu0 0
      %508 = vmatprep.subr.bf16.mxu0 0
      %509 = vmatpush1.bf16.msra.mxu0 0
      %510 = vmatprep.subr.bf16.mxu0 0
      %511 = vmatpush1.bf16.msra.mxu0 0
      %512 = vmatprep.subr.bf16.mxu0 0
      %513 = vmatpush1.bf16.msra.mxu0 0
      %514 = vmatprep.subr.bf16.mxu0 0
      %515 = vmatpush1.bf16.msra.mxu0 0
      %516 = vmatprep.subr.bf16.mxu0 0
      %517 = vmatpush1.bf16.msra.mxu0 0
      %518 = vmatprep.subr.bf16.mxu0 0
      %519 = vmatpush1.bf16.msra.mxu0 0
      %520 = vmatprep.subr.bf16.mxu0 0
      %521 = vmatpush1.bf16.msra.mxu0 0
      %522 = vmatprep.subr.bf16.mxu0 0
      %523 = vmatpush1.bf16.msra.mxu0 0
      %524 = vmatprep.subr.bf16.mxu0 0
      %525 = vmatpush1.bf16.msra.mxu0 0
      %526 = vmatprep.subr.bf16.mxu0 0
      %527 = vmatpush1.bf16.msra.mxu0 0
      %528 = vmatprep.mubr.bf16.mxu0 0
      %529 = vmatmul.mubr.bf16.gmra.mrb[0].mxu0 %v494
      %v530 = vpop.f32.mrb[0].mxu0
      %v531 = vadd.f32 0.0, %v530
      %v532 = vpop.f32.mrb[0].mxu0
      %v533 = vpop.f32.mrb[0].mxu0
      %v534 = vadd.f32 0.0, %v533
      %v535 = vpop.f32.mrb[0].mxu0
      %536 = vdwg.mxu0
      %v537 = vadd.f32 %v453, %v531
      %v538 = vadd.f32 %v456, %v534
      %v539 = vld [vmem:[%s2] sm:$0x1]
      %v541 = vlaneseq
      %v542 = vshrl.u32 %v541, 7
      %v543 = vsub.s32 0, %v542
      %v544 = vrot.slane %v539, %v543
      %v546 = vadd.f32 %v537, %v544
      %v547 = vadd.f32 %v538, %v544
      %v548 = vmax.f32 %v546, 0.0
      %v549 = vmax.f32 %v547, 0.0
      %v550 = vrot.slane %v548, 7
      %v551 = vrot.slane %v549, 7
      %v552 = vsel %vm289, %v550, %v551
      %v553 = vsel %vm289, %v551, %v550
      %v554 = vsel %vm285, 0.0, %v553
      %v555 = vsel %vm286, 0.0, %v552
      %v556 = vrot.slane %v548, 1
      %v557 = vrot.slane %v549, 1
      %v558 = vsel %vm298, %v556, %v557
      %v559 = vsel %vm298, %v557, %v556
      %v560 = vsel %vm294, 0.0, %v558
      %v561 = vsel %vm295, 0.0, %v559
      %v562 = vpack.c.bf16 %v555, %v554
      %v563 = vld [vmem:[%s3] sm:$0xf]
      %v564 = vld [vmem:[%s3 + $0x4] sm:$0xf]
      %v565 = vld [vmem:[%s3 + $0x8] sm:$0xf]
      %v566 = vld [vmem:[%s3 + $0xc] sm:$0xf]
      %v567 = vld [vmem:[%s3 + $0x10] sm:$0xf]
      %v568 = vld [vmem:[%s3 + $0x14] sm:$0xf]
      %v569 = vld [vmem:[%s3 + $0x18] sm:$0xf]
      %v570 = vld [vmem:[%s3 + $0x1c] sm:$0xf]
      %v571 = vld [vmem:[%s3 + $0x20] sm:$0xf]
      %v572 = vld [vmem:[%s3 + $0x24] sm:$0xf]
      %v573 = vld [vmem:[%s3 + $0x28] sm:$0xf]
      %v574 = vld [vmem:[%s3 + $0x2c] sm:$0xf]
      %v575 = vld [vmem:[%s3 + $0x30] sm:$0xf]
      %v576 = vld [vmem:[%s3 + $0x34] sm:$0xf]
      %v577 = vld [vmem:[%s3 + $0x38] sm:$0xf]
      %v578 = vld [vmem:[%s3 + $0x3c] sm:$0xf]
      %v579 = vpack.c.bf16 %v549, %v548
      %s580 = scalar_lea.vmem %s3, 64
      %v581 = vld [vmem:[%s580] sm:$0xf]
      %v582 = vld [vmem:[%s580 + $0x4] sm:$0xf]
      %v583 = vld [vmem:[%s580 + $0x8] sm:$0xf]
      %v584 = vld [vmem:[%s580 + $0xc] sm:$0xf]
      %v585 = vld [vmem:[%s580 + $0x10] sm:$0xf]
      %v586 = vld [vmem:[%s580 + $0x14] sm:$0xf]
      %v587 = vld [vmem:[%s580 + $0x18] sm:$0xf]
      %v588 = vld [vmem:[%s580 + $0x1c] sm:$0xf]
      %v589 = vld [vmem:[%s580 + $0x20] sm:$0xf]
      %v590 = vld [vmem:[%s580 + $0x24] sm:$0xf]
      %v591 = vld [vmem:[%s580 + $0x28] sm:$0xf]
      %v592 = vld [vmem:[%s580 + $0x2c] sm:$0xf]
      %v593 = vld [vmem:[%s580 + $0x30] sm:$0xf]
      %v594 = vld [vmem:[%s580 + $0x34] sm:$0xf]
      %v595 = vld [vmem:[%s580 + $0x38] sm:$0xf]
      %v596 = vld [vmem:[%s580 + $0x3c] sm:$0xf]
      %v613 = vunpack.c.l.b16 %v581
      %v614 = vunpack.c.l.b16 %v582
      %v615 = vunpack.c.l.b16 %v583
      %v616 = vunpack.c.l.b16 %v584
      %v617 = vunpack.c.l.b16 %v585
      %v618 = vunpack.c.l.b16 %v586
      %v619 = vunpack.c.l.b16 %v587
      %v620 = vunpack.c.l.b16 %v588
      %v621 = vunpack.c.l.b16 %v589
      %v622 = vunpack.c.l.b16 %v590
      %v623 = vunpack.c.l.b16 %v591
      %v624 = vunpack.c.l.b16 %v592
      %v625 = vunpack.c.l.b16 %v593
      %v626 = vunpack.c.l.b16 %v594
      %v627 = vunpack.c.l.b16 %v595
      %v628 = vunpack.c.l.b16 %v596
      %v629 = vpack.c.b16 %v614, %v613
      %v630 = vpack.c.b16 %v616, %v615
      %v631 = vpack.c.b16 %v618, %v617
      %v632 = vpack.c.b16 %v620, %v619
      %v633 = vpack.c.b16 %v622, %v621
      %v634 = vpack.c.b16 %v624, %v623
      %v635 = vpack.c.b16 %v626, %v625
      %v636 = vpack.c.b16 %v628, %v627
      %645 = vmatprep.subr.bf16.mxu0 0
      %646 = vmatpush1.bf16.msra.mxu0 %v629
      %647 = vmatprep.subr.bf16.mxu0 0
      %648 = vmatpush1.bf16.msra.mxu0 %v630
      %649 = vmatprep.subr.bf16.mxu0 0
      %650 = vmatpush1.bf16.msra.mxu0 %v631
      %651 = vmatprep.subr.bf16.mxu0 0
      %652 = vmatpush1.bf16.msra.mxu0 %v632
      %653 = vmatprep.subr.bf16.mxu0 0
      %654 = vmatpush1.bf16.msra.mxu0 %v633
      %655 = vmatprep.subr.bf16.mxu0 0
      %656 = vmatpush1.bf16.msra.mxu0 %v634
      %657 = vmatprep.subr.bf16.mxu0 0
      %658 = vmatpush1.bf16.msra.mxu0 %v635
      %659 = vmatprep.subr.bf16.mxu0 0
      %660 = vmatpush1.bf16.msra.mxu0 %v636
      %661 = vmatprep.subr.bf16.mxu0 0
      %662 = vmatpush1.bf16.msra.mxu0 0
      %663 = vmatprep.subr.bf16.mxu0 0
      %664 = vmatpush1.bf16.msra.mxu0 0
      %665 = vmatprep.subr.bf16.mxu0 0
      %666 = vmatpush1.bf16.msra.mxu0 0
      %667 = vmatprep.subr.bf16.mxu0 0
      %668 = vmatpush1.bf16.msra.mxu0 0
      %669 = vmatprep.subr.bf16.mxu0 0
      %670 = vmatpush1.bf16.msra.mxu0 0
      %671 = vmatprep.subr.bf16.mxu0 0
      %672 = vmatpush1.bf16.msra.mxu0 0
      %673 = vmatprep.subr.bf16.mxu0 0
      %674 = vmatpush1.bf16.msra.mxu0 0
      %675 = vmatprep.subr.bf16.mxu0 0
      %676 = vmatpush1.bf16.msra.mxu0 0
      %677 = vmatprep.mubr.bf16.mxu0 0
      %678 = vmatmul.mubr.bf16.gmra.mrb[0].mxu0 %v579
      %v679 = vpop.f32.mrb[0].mxu0
      %v680 = vadd.f32 0.0, %v679
      %v681 = vpop.f32.mrb[0].mxu0
      %v682 = vpop.f32.mrb[0].mxu0
      %v683 = vadd.f32 0.0, %v682
      %v684 = vpop.f32.mrb[0].mxu0
      %685 = vdwg.mxu0
      %v702 = vunpack.c.l.b16 %v563
      %v703 = vunpack.c.l.b16 %v564
      %v704 = vunpack.c.l.b16 %v565
      %v705 = vunpack.c.l.b16 %v566
      %v706 = vunpack.c.l.b16 %v567
      %v707 = vunpack.c.l.b16 %v568
      %v708 = vunpack.c.l.b16 %v569
      %v709 = vunpack.c.l.b16 %v570
      %v710 = vunpack.c.l.b16 %v571
      %v711 = vunpack.c.l.b16 %v572
      %v712 = vunpack.c.l.b16 %v573
      %v713 = vunpack.c.l.b16 %v574
      %v714 = vunpack.c.l.b16 %v575
      %v715 = vunpack.c.l.b16 %v576
      %v716 = vunpack.c.l.b16 %v577
      %v717 = vunpack.c.l.b16 %v578
      %v718 = vpack.c.b16 %v703, %v702
      %v719 = vpack.c.b16 %v705, %v704
      %v720 = vpack.c.b16 %v707, %v706
      %v721 = vpack.c.b16 %v709, %v708
      %v722 = vpack.c.b16 %v711, %v710
      %v723 = vpack.c.b16 %v713, %v712
      %v724 = vpack.c.b16 %v715, %v714
      %v725 = vpack.c.b16 %v717, %v716
      %734 = vmatprep.subr.bf16.mxu0 0
      %735 = vmatpush1.bf16.msra.mxu0 %v718
      %736 = vmatprep.subr.bf16.mxu0 0
      %737 = vmatpush1.bf16.msra.mxu0 %v719
      %738 = vmatprep.subr.bf16.mxu0 0
      %739 = vmatpush1.bf16.msra.mxu0 %v720
      %740 = vmatprep.subr.bf16.mxu0 0
      %741 = vmatpush1.bf16.msra.mxu0 %v721
      %742 = vmatprep.subr.bf16.mxu0 0
      %743 = vmatpush1.bf16.msra.mxu0 %v722
      %744 = vmatprep.subr.bf16.mxu0 0
      %745 = vmatpush1.bf16.msra.mxu0 %v723
      %746 = vmatprep.subr.bf16.mxu0 0
      %747 = vmatpush1.bf16.msra.mxu0 %v724
      %748 = vmatprep.subr.bf16.mxu0 0
      %749 = vmatpush1.bf16.msra.mxu0 %v725
      %750 = vmatprep.subr.bf16.mxu0 0
      %751 = vmatpush1.bf16.msra.mxu0 0
      %752 = vmatprep.subr.bf16.mxu0 0
      %753 = vmatpush1.bf16.msra.mxu0 0
      %754 = vmatprep.subr.bf16.mxu0 0
      %755 = vmatpush1.bf16.msra.mxu0 0
      %756 = vmatprep.subr.bf16.mxu0 0
      %757 = vmatpush1.bf16.msra.mxu0 0
      %758 = vmatprep.subr.bf16.mxu0 0
      %759 = vmatpush1.bf16.msra.mxu0 0
      %760 = vmatprep.subr.bf16.mxu0 0
      %761 = vmatpush1.bf16.msra.mxu0 0
      %762 = vmatprep.subr.bf16.mxu0 0
      %763 = vmatpush1.bf16.msra.mxu0 0
      %764 = vmatprep.subr.bf16.mxu0 0
      %765 = vmatpush1.bf16.msra.mxu0 0
      %766 = vmatprep.mubr.bf16.mxu0 0
      %767 = vmatmul.mubr.bf16.gmra.mrb[0].mxu0 %v562
      %v768 = vpop.f32.mrb[0].mxu0
      %v769 = vadd.f32 %v680, %v768
      %v770 = vpop.f32.mrb[0].mxu0
      %v771 = vpop.f32.mrb[0].mxu0
      %v772 = vadd.f32 %v683, %v771
      %v773 = vpop.f32.mrb[0].mxu0
      %774 = vdwg.mxu0
      %v775 = vpack.c.bf16 %v561, %v560
      %s776 = scalar_lea.vmem %s3, 128
      %v777 = vld [vmem:[%s776] sm:$0xf]
      %v778 = vld [vmem:[%s776 + $0x4] sm:$0xf]
      %v779 = vld [vmem:[%s776 + $0x8] sm:$0xf]
      %v780 = vld [vmem:[%s776 + $0xc] sm:$0xf]
      %v781 = vld [vmem:[%s776 + $0x10] sm:$0xf]
      %v782 = vld [vmem:[%s776 + $0x14] sm:$0xf]
      %v783 = vld [vmem:[%s776 + $0x18] sm:$0xf]
      %v784 = vld [vmem:[%s776 + $0x1c] sm:$0xf]
      %v785 = vld [vmem:[%s776 + $0x20] sm:$0xf]
      %v786 = vld [vmem:[%s776 + $0x24] sm:$0xf]
      %v787 = vld [vmem:[%s776 + $0x28] sm:$0xf]
      %v788 = vld [vmem:[%s776 + $0x2c] sm:$0xf]
      %v789 = vld [vmem:[%s776 + $0x30] sm:$0xf]
      %v790 = vld [vmem:[%s776 + $0x34] sm:$0xf]
      %v791 = vld [vmem:[%s776 + $0x38] sm:$0xf]
      %v792 = vld [vmem:[%s776 + $0x3c] sm:$0xf]
      %v809 = vunpack.c.l.b16 %v777
      %v810 = vunpack.c.l.b16 %v778
      %v811 = vunpack.c.l.b16 %v779
      %v812 = vunpack.c.l.b16 %v780
      %v813 = vunpack.c.l.b16 %v781
      %v814 = vunpack.c.l.b16 %v782
      %v815 = vunpack.c.l.b16 %v783
      %v816 = vunpack.c.l.b16 %v784
      %v817 = vunpack.c.l.b16 %v785
      %v818 = vunpack.c.l.b16 %v786
      %v819 = vunpack.c.l.b16 %v787
      %v820 = vunpack.c.l.b16 %v788
      %v821 = vunpack.c.l.b16 %v789
      %v822 = vunpack.c.l.b16 %v790
      %v823 = vunpack.c.l.b16 %v791
      %v824 = vunpack.c.l.b16 %v792
      %v825 = vpack.c.b16 %v810, %v809
      %v826 = vpack.c.b16 %v812, %v811
      %v827 = vpack.c.b16 %v814, %v813
      %v828 = vpack.c.b16 %v816, %v815
      %v829 = vpack.c.b16 %v818, %v817
      %v830 = vpack.c.b16 %v820, %v819
      %v831 = vpack.c.b16 %v822, %v821
      %v832 = vpack.c.b16 %v824, %v823
      %841 = vmatprep.subr.bf16.mxu0 0
      %842 = vmatpush1.bf16.msra.mxu0 %v825
      %843 = vmatprep.subr.bf16.mxu0 0
      %844 = vmatpush1.bf16.msra.mxu0 %v826
      %845 = vmatprep.subr.bf16.mxu0 0
      %846 = vmatpush1.bf16.msra.mxu0 %v827
      %847 = vmatprep.subr.bf16.mxu0 0
      %848 = vmatpush1.bf16.msra.mxu0 %v828
      %849 = vmatprep.subr.bf16.mxu0 0
      %850 = vmatpush1.bf16.msra.mxu0 %v829
      %851 = vmatprep.subr.bf16.mxu0 0
      %852 = vmatpush1.bf16.msra.mxu0 %v830
      %853 = vmatprep.subr.bf16.mxu0 0
      %854 = vmatpush1.bf16.msra.mxu0 %v831
      %855 = vmatprep.subr.bf16.mxu0 0
      %856 = vmatpush1.bf16.msra.mxu0 %v832
      %857 = vmatprep.subr.bf16.mxu0 0
      %858 = vmatpush1.bf16.msra.mxu0 0
      %859 = vmatprep.subr.bf16.mxu0 0
      %860 = vmatpush1.bf16.msra.mxu0 0
      %861 = vmatprep.subr.bf16.mxu0 0
      %862 = vmatpush1.bf16.msra.mxu0 0
      %863 = vmatprep.subr.bf16.mxu0 0
      %864 = vmatpush1.bf16.msra.mxu0 0
      %865 = vmatprep.subr.bf16.mxu0 0
      %866 = vmatpush1.bf16.msra.mxu0 0
      %867 = vmatprep.subr.bf16.mxu0 0
      %868 = vmatpush1.bf16.msra.mxu0 0
      %869 = vmatprep.subr.bf16.mxu0 0
      %870 = vmatpush1.bf16.msra.mxu0 0
      %871 = vmatprep.subr.bf16.mxu0 0
      %872 = vmatpush1.bf16.msra.mxu0 0
      %873 = vmatprep.mubr.bf16.mxu0 0
      %874 = vmatmul.mubr.bf16.gmra.mrb[0].mxu0 %v775
      %v875 = vpop.f32.mrb[0].mxu0
      %v876 = vadd.f32 0.0, %v875
      %v877 = vpop.f32.mrb[0].mxu0
      %v878 = vpop.f32.mrb[0].mxu0
      %v879 = vadd.f32 0.0, %v878
      %v880 = vpop.f32.mrb[0].mxu0
      %881 = vdwg.mxu0
      %v882 = vadd.f32 %v769, %v876
      %v883 = vadd.f32 %v772, %v879
      %v884 = vld [vmem:[%s4] sm:$0x1]
      %v886 = vlaneseq
      %v887 = vshrl.u32 %v886, 7
      %v888 = vsub.s32 0, %v887
      %v889 = vrot.slane %v884, %v888
      %v891 = vadd.f32 %v882, %v889
      %v892 = vadd.f32 %v883, %v889
      %v893 = vmax.f32 %v891, 0.0
      %v894 = vmax.f32 %v892, 0.0
      %v895 = vrot.slane %v893, 7
      %v896 = vrot.slane %v894, 7
      %v897 = vsel %vm289, %v895, %v896
      %v898 = vsel %vm289, %v896, %v895
      %v899 = vsel %vm285, 0.0, %v898
      %v900 = vsel %vm286, 0.0, %v897
      %v901 = vrot.slane %v893, 1
      %v902 = vrot.slane %v894, 1
      %v903 = vsel %vm298, %v901, %v902
      %v904 = vsel %vm298, %v902, %v901
      %v905 = vsel %vm294, 0.0, %v903
      %v906 = vsel %vm295, 0.0, %v904
      %v907 = vpack.c.bf16 %v900, %v899
      %v908 = vld [vmem:[%s5] sm:$0xf]
      %v909 = vld [vmem:[%s5 + $0x4] sm:$0xf]
      %v910 = vld [vmem:[%s5 + $0x8] sm:$0xf]
      %v911 = vld [vmem:[%s5 + $0xc] sm:$0xf]
      %v912 = vld [vmem:[%s5 + $0x10] sm:$0xf]
      %v913 = vld [vmem:[%s5 + $0x14] sm:$0xf]
      %v914 = vld [vmem:[%s5 + $0x18] sm:$0xf]
      %v915 = vld [vmem:[%s5 + $0x1c] sm:$0xf]
      %v916 = vld [vmem:[%s5 + $0x20] sm:$0xf]
      %v917 = vld [vmem:[%s5 + $0x24] sm:$0xf]
      %v918 = vld [vmem:[%s5 + $0x28] sm:$0xf]
      %v919 = vld [vmem:[%s5 + $0x2c] sm:$0xf]
      %v920 = vld [vmem:[%s5 + $0x30] sm:$0xf]
      %v921 = vld [vmem:[%s5 + $0x34] sm:$0xf]
      %v922 = vld [vmem:[%s5 + $0x38] sm:$0xf]
      %v923 = vld [vmem:[%s5 + $0x3c] sm:$0xf]
      %v924 = vpack.c.bf16 %v894, %v893
      %s925 = scalar_lea.vmem %s5, 64
      %v926 = vld [vmem:[%s925] sm:$0xf]
      %v927 = vld [vmem:[%s925 + $0x4] sm:$0xf]
      %v928 = vld [vmem:[%s925 + $0x8] sm:$0xf]
      %v929 = vld [vmem:[%s925 + $0xc] sm:$0xf]
      %v930 = vld [vmem:[%s925 + $0x10] sm:$0xf]
      %v931 = vld [vmem:[%s925 + $0x14] sm:$0xf]
      %v932 = vld [vmem:[%s925 + $0x18] sm:$0xf]
      %v933 = vld [vmem:[%s925 + $0x1c] sm:$0xf]
      %v934 = vld [vmem:[%s925 + $0x20] sm:$0xf]
      %v935 = vld [vmem:[%s925 + $0x24] sm:$0xf]
      %v936 = vld [vmem:[%s925 + $0x28] sm:$0xf]
      %v937 = vld [vmem:[%s925 + $0x2c] sm:$0xf]
      %v938 = vld [vmem:[%s925 + $0x30] sm:$0xf]
      %v939 = vld [vmem:[%s925 + $0x34] sm:$0xf]
      %v940 = vld [vmem:[%s925 + $0x38] sm:$0xf]
      %v941 = vld [vmem:[%s925 + $0x3c] sm:$0xf]
      %v958 = vunpack.c.l.b16 %v926
      %v959 = vunpack.c.l.b16 %v927
      %v960 = vunpack.c.l.b16 %v928
      %v961 = vunpack.c.l.b16 %v929
      %v962 = vunpack.c.l.b16 %v930
      %v963 = vunpack.c.l.b16 %v931
      %v964 = vunpack.c.l.b16 %v932
      %v965 = vunpack.c.l.b16 %v933
      %v966 = vunpack.c.l.b16 %v934
      %v967 = vunpack.c.l.b16 %v935
      %v968 = vunpack.c.l.b16 %v936
      %v969 = vunpack.c.l.b16 %v937
      %v970 = vunpack.c.l.b16 %v938
      %v971 = vunpack.c.l.b16 %v939
      %v972 = vunpack.c.l.b16 %v940
      %v973 = vunpack.c.l.b16 %v941
      %v974 = vpack.c.b16 %v959, %v958
      %v975 = vpack.c.b16 %v961, %v960
      %v976 = vpack.c.b16 %v963, %v962
      %v977 = vpack.c.b16 %v965, %v964
      %v978 = vpack.c.b16 %v967, %v966
      %v979 = vpack.c.b16 %v969, %v968
      %v980 = vpack.c.b16 %v971, %v970
      %v981 = vpack.c.b16 %v973, %v972
      %990 = vmatprep.subr.bf16.mxu0 0
      %991 = vmatpush1.bf16.msra.mxu0 %v974
      %992 = vmatprep.subr.bf16.mxu0 0
      %993 = vmatpush1.bf16.msra.mxu0 %v975
      %994 = vmatprep.subr.bf16.mxu0 0
      %995 = vmatpush1.bf16.msra.mxu0 %v976
      %996 = vmatprep.subr.bf16.mxu0 0
      %997 = vmatpush1.bf16.msra.mxu0 %v977
      %998 = vmatprep.subr.bf16.mxu0 0
      %999 = vmatpush1.bf16.msra.mxu0 %v978
      %1000 = vmatprep.subr.bf16.mxu0 0
      %1001 = vmatpush1.bf16.msra.mxu0 %v979
      %1002 = vmatprep.subr.bf16.mxu0 0
      %1003 = vmatpush1.bf16.msra.mxu0 %v980
      %1004 = vmatprep.subr.bf16.mxu0 0
      %1005 = vmatpush1.bf16.msra.mxu0 %v981
      %1006 = vmatprep.subr.bf16.mxu0 0
      %1007 = vmatpush1.bf16.msra.mxu0 0
      %1008 = vmatprep.subr.bf16.mxu0 0
      %1009 = vmatpush1.bf16.msra.mxu0 0
      %1010 = vmatprep.subr.bf16.mxu0 0
      %1011 = vmatpush1.bf16.msra.mxu0 0
      %1012 = vmatprep.subr.bf16.mxu0 0
      %1013 = vmatpush1.bf16.msra.mxu0 0
      %1014 = vmatprep.subr.bf16.mxu0 0
      %1015 = vmatpush1.bf16.msra.mxu0 0
      %1016 = vmatprep.subr.bf16.mxu0 0
      %1017 = vmatpush1.bf16.msra.mxu0 0
      %1018 = vmatprep.subr.bf16.mxu0 0
      %1019 = vmatpush1.bf16.msra.mxu0 0
      %1020 = vmatprep.subr.bf16.mxu0 0
      %1021 = vmatpush1.bf16.msra.mxu0 0
      %1022 = vmatprep.mubr.bf16.mxu0 0
      %1023 = vmatmul.mubr.bf16.gmra.mrb[0].mxu0 %v924
      %v1024 = vpop.f32.mrb[0].mxu0
      %v1025 = vadd.f32 0.0, %v1024
      %v1026 = vpop.f32.mrb[0].mxu0
      %v1027 = vpop.f32.mrb[0].mxu0
      %v1028 = vadd.f32 0.0, %v1027
      %v1029 = vpop.f32.mrb[0].mxu0
      %1030 = vdwg.mxu0
      %v1047 = vunpack.c.l.b16 %v908
      %v1048 = vunpack.c.l.b16 %v909
      %v1049 = vunpack.c.l.b16 %v910
      %v1050 = vunpack.c.l.b16 %v911
      %v1051 = vunpack.c.l.b16 %v912
      %v1052 = vunpack.c.l.b16 %v913
      %v1053 = vunpack.c.l.b16 %v914
      %v1054 = vunpack.c.l.b16 %v915
      %v1055 = vunpack.c.l.b16 %v916
      %v1056 = vunpack.c.l.b16 %v917
      %v1057 = vunpack.c.l.b16 %v918
      %v1058 = vunpack.c.l.b16 %v919
      %v1059 = vunpack.c.l.b16 %v920
      %v1060 = vunpack.c.l.b16 %v921
      %v1061 = vunpack.c.l.b16 %v922
      %v1062 = vunpack.c.l.b16 %v923
      %v1063 = vpack.c.b16 %v1048, %v1047
      %v1064 = vpack.c.b16 %v1050, %v1049
      %v1065 = vpack.c.b16 %v1052, %v1051
      %v1066 = vpack.c.b16 %v1054, %v1053
      %v1067 = vpack.c.b16 %v1056, %v1055
      %v1068 = vpack.c.b16 %v1058, %v1057
      %v1069 = vpack.c.b16 %v1060, %v1059
      %v1070 = vpack.c.b16 %v1062, %v1061
      %1079 = vmatprep.subr.bf16.mxu0 0
      %1080 = vmatpush1.bf16.msra.mxu0 %v1063
      %1081 = vmatprep.subr.bf16.mxu0 0
      %1082 = vmatpush1.bf16.msra.mxu0 %v1064
      %1083 = vmatprep.subr.bf16.mxu0 0
      %1084 = vmatpush1.bf16.msra.mxu0 %v1065
      %1085 = vmatprep.subr.bf16.mxu0 0
      %1086 = vmatpush1.bf16.msra.mxu0 %v1066
      %1087 = vmatprep.subr.bf16.mxu0 0
      %1088 = vmatpush1.bf16.msra.mxu0 %v1067
      %1089 = vmatprep.subr.bf16.mxu0 0
      %1090 = vmatpush1.bf16.msra.mxu0 %v1068
      %1091 = vmatprep.subr.bf16.mxu0 0
      %1092 = vmatpush1.bf16.msra.mxu0 %v1069
      %1093 = vmatprep.subr.bf16.mxu0 0
      %1094 = vmatpush1.bf16.msra.mxu0 %v1070
      %1095 = vmatprep.subr.bf16.mxu0 0
      %1096 = vmatpush1.bf16.msra.mxu0 0
      %1097 = vmatprep.subr.bf16.mxu0 0
      %1098 = vmatpush1.bf16.msra.mxu0 0
      %1099 = vmatprep.subr.bf16.mxu0 0
      %1100 = vmatpush1.bf16.msra.mxu0 0
      %1101 = vmatprep.subr.bf16.mxu0 0
      %1102 = vmatpush1.bf16.msra.mxu0 0
      %1103 = vmatprep.subr.bf16.mxu0 0
      %1104 = vmatpush1.bf16.msra.mxu0 0
      %1105 = vmatprep.subr.bf16.mxu0 0
      %1106 = vmatpush1.bf16.msra.mxu0 0
      %1107 = vmatprep.subr.bf16.mxu0 0
      %1108 = vmatpush1.bf16.msra.mxu0 0
      %1109 = vmatprep.subr.bf16.mxu0 0
      %1110 = vmatpush1.bf16.msra.mxu0 0
      %1111 = vmatprep.mubr.bf16.mxu0 0
      %1112 = vmatmul.mubr.bf16.gmra.mrb[0].mxu0 %v907
      %v1113 = vpop.f32.mrb[0].mxu0
      %v1114 = vadd.f32 %v1025, %v1113
      %v1115 = vpop.f32.mrb[0].mxu0
      %v1116 = vpop.f32.mrb[0].mxu0
      %v1117 = vadd.f32 %v1028, %v1116
      %v1118 = vpop.f32.mrb[0].mxu0
      %1119 = vdwg.mxu0
      %v1120 = vpack.c.bf16 %v906, %v905
      %s1121 = scalar_lea.vmem %s5, 128
      %v1122 = vld [vmem:[%s1121] sm:$0xf]
      %v1123 = vld [vmem:[%s1121 + $0x4] sm:$0xf]
      %v1124 = vld [vmem:[%s1121 + $0x8] sm:$0xf]
      %v1125 = vld [vmem:[%s1121 + $0xc] sm:$0xf]
      %v1126 = vld [vmem:[%s1121 + $0x10] sm:$0xf]
      %v1127 = vld [vmem:[%s1121 + $0x14] sm:$0xf]
      %v1128 = vld [vmem:[%s1121 + $0x18] sm:$0xf]
      %v1129 = vld [vmem:[%s1121 + $0x1c] sm:$0xf]
      %v1130 = vld [vmem:[%s1121 + $0x20] sm:$0xf]
      %v1131 = vld [vmem:[%s1121 + $0x24] sm:$0xf]
      %v1132 = vld [vmem:[%s1121 + $0x28] sm:$0xf]
      %v1133 = vld [vmem:[%s1121 + $0x2c] sm:$0xf]
      %v1134 = vld [vmem:[%s1121 + $0x30] sm:$0xf]
      %v1135 = vld [vmem:[%s1121 + $0x34] sm:$0xf]
      %v1136 = vld [vmem:[%s1121 + $0x38] sm:$0xf]
      %v1137 = vld [vmem:[%s1121 + $0x3c] sm:$0xf]
      %v1154 = vunpack.c.l.b16 %v1122
      %v1155 = vunpack.c.l.b16 %v1123
      %v1156 = vunpack.c.l.b16 %v1124
      %v1157 = vunpack.c.l.b16 %v1125
      %v1158 = vunpack.c.l.b16 %v1126
      %v1159 = vunpack.c.l.b16 %v1127
      %v1160 = vunpack.c.l.b16 %v1128
      %v1161 = vunpack.c.l.b16 %v1129
      %v1162 = vunpack.c.l.b16 %v1130
      %v1163 = vunpack.c.l.b16 %v1131
      %v1164 = vunpack.c.l.b16 %v1132
      %v1165 = vunpack.c.l.b16 %v1133
      %v1166 = vunpack.c.l.b16 %v1134
      %v1167 = vunpack.c.l.b16 %v1135
      %v1168 = vunpack.c.l.b16 %v1136
      %v1169 = vunpack.c.l.b16 %v1137
      %v1170 = vpack.c.b16 %v1155, %v1154
      %v1171 = vpack.c.b16 %v1157, %v1156
      %v1172 = vpack.c.b16 %v1159, %v1158
      %v1173 = vpack.c.b16 %v1161, %v1160
      %v1174 = vpack.c.b16 %v1163, %v1162
      %v1175 = vpack.c.b16 %v1165, %v1164
      %v1176 = vpack.c.b16 %v1167, %v1166
      %v1177 = vpack.c.b16 %v1169, %v1168
      %1186 = vmatprep.subr.bf16.mxu0 0
      %1187 = vmatpush1.bf16.msra.mxu0 %v1170
      %1188 = vmatprep.subr.bf16.mxu0 0
      %1189 = vmatpush1.bf16.msra.mxu0 %v1171
      %1190 = vmatprep.subr.bf16.mxu0 0
      %1191 = vmatpush1.bf16.msra.mxu0 %v1172
      %1192 = vmatprep.subr.bf16.mxu0 0
      %1193 = vmatpush1.bf16.msra.mxu0 %v1173
      %1194 = vmatprep.subr.bf16.mxu0 0
      %1195 = vmatpush1.bf16.msra.mxu0 %v1174
      %1196 = vmatprep.subr.bf16.mxu0 0
      %1197 = vmatpush1.bf16.msra.mxu0 %v1175
      %1198 = vmatprep.subr.bf16.mxu0 0
      %1199 = vmatpush1.bf16.msra.mxu0 %v1176
      %1200 = vmatprep.subr.bf16.mxu0 0
      %1201 = vmatpush1.bf16.msra.mxu0 %v1177
      %1202 = vmatprep.subr.bf16.mxu0 0
      %1203 = vmatpush1.bf16.msra.mxu0 0
      %1204 = vmatprep.subr.bf16.mxu0 0
      %1205 = vmatpush1.bf16.msra.mxu0 0
      %1206 = vmatprep.subr.bf16.mxu0 0
      %1207 = vmatpush1.bf16.msra.mxu0 0
      %1208 = vmatprep.subr.bf16.mxu0 0
      %1209 = vmatpush1.bf16.msra.mxu0 0
      %1210 = vmatprep.subr.bf16.mxu0 0
      %1211 = vmatpush1.bf16.msra.mxu0 0
      %1212 = vmatprep.subr.bf16.mxu0 0
      %1213 = vmatpush1.bf16.msra.mxu0 0
      %1214 = vmatprep.subr.bf16.mxu0 0
      %1215 = vmatpush1.bf16.msra.mxu0 0
      %1216 = vmatprep.subr.bf16.mxu0 0
      %1217 = vmatpush1.bf16.msra.mxu0 0
      %1218 = vmatprep.mubr.bf16.mxu0 0
      %1219 = vmatmul.mubr.bf16.gmra.mrb[0].mxu0 %v1120
      %v1220 = vpop.f32.mrb[0].mxu0
      %v1221 = vadd.f32 0.0, %v1220
      %v1222 = vpop.f32.mrb[0].mxu0
      %v1223 = vpop.f32.mrb[0].mxu0
      %v1224 = vadd.f32 0.0, %v1223
      %v1225 = vpop.f32.mrb[0].mxu0
      %1226 = vdwg.mxu0
      %v1227 = vadd.f32 %v1114, %v1221
      %v1228 = vadd.f32 %v1117, %v1224
      %v1229 = vld [vmem:[%s6] sm:$0x1]
      %v1231 = vlaneseq
      %v1232 = vshrl.u32 %v1231, 7
      %v1233 = vsub.s32 0, %v1232
      %v1234 = vrot.slane %v1229, %v1233
      %v1236 = vadd.f32 %v1227, %v1234
      %v1237 = vadd.f32 %v1228, %v1234
      %v1238 = vmax.f32 %v1236, 0.0
      %v1239 = vmax.f32 %v1237, 0.0
      %1240 = vst [vmem:[%s278] sm:$0xff] %v1238
      %1241 = vst [vmem:[%s278 + $0x8] sm:$0xff] %v1239
      %p1242 = scmp.lt.s32.totalorder %s18, 1
      %s1243 = scalar_select %p1242, %s18, 1
      %s1244 = smul.addr %s1243, 2
      %s1245 = smul.addr %s1244, 8
      %s1246 = scalar_lea.vmem %s7, %s1245
      // Predicated region
      $region49: #{conv_layer_3_forward.1} parent=47 // pred_check
        %p1247 = pneg %p188
      $region50: #{conv_layer_3_forward.1} parent=47 // pred_check_branch
        %1249 = sbr.rel (%p1247) target = $region52
      $region51: #{conv_layer_3_forward.1} parent=47 // pred_region
        _
      $region52: #{conv_layer_3_forward.1} parent=47 // pred_fallthru
        _
    $region48: #{conv_layer_3_forward.1} parent=5 // pred_fallthru
      _
    %p1250 = scmp.le.s32.totalorder 2, %s13
    // Predicated region
    $region53: #{conv_layer_3_forward.1} parent=5 // pred_check
      %p1251 = pneg %p1250
    $region54: #{conv_layer_3_forward.1} parent=5 // pred_check_branch
      %1253 = sbr.rel (%p1251) target = $region56
    $region55: #{conv_layer_3_forward.1} parent=5 // pred_region
      %s1254 = ssub.s32 %s13, 2
      // Predicated region
      $region57: #{conv_layer_3_forward.1} parent=55 // pred_check
        %p1255 = pneg %p194
      $region58: #{conv_layer_3_forward.1} parent=55 // pred_check_branch
        %1257 = sbr.rel (%p1255) target = $region60
      $region59: #{conv_layer_3_forward.1} parent=55 // pred_region
        %p1258 = scmp.lt.s32.totalorder %s19, 1
        %s1259 = scalar_select %p1258, %s19, 1
        %s1260 = smul.addr %s1259, 2
        %s1261 = smul.addr %s1260, 8
        %s1262 = scalar_lea.vmem %s7, %s1261
      $region60: #{conv_layer_3_forward.1} parent=55 // pred_fallthru
        _
    $region56: #{conv_layer_3_forward.1} parent=5 // pred_fallthru
      _
  $region6: #{conv_layer_3_forward.1} parent=0 // loop_footer
    %s17 = sadd.s32 1, %s13
  $region7: #{conv_layer_3_forward.1} parent=0 // loop_footer_branch
    %12 = sbr.rel target = $region3
  $region8: #{conv_layer_3_forward.1} parent=0 // loop_exit
    _

</llo_original>
